<compile_context>
chip_gen: v7x
topology: tpu7x:2x2x1
jax: 0.10.0
libtpu: 0.0.40
codegen_flags: <defaults>
</compile_context>

<pallas_src>
import functools
import inspect
import math

import jax
import jax.numpy as jnp
from jax.experimental import pallas as pl
from jax.experimental.pallas import tpu as pltpu

_INV_SQRT2 = 0.7071067811865476


# ----------------------------------------------------------------------------
# small helpers
# ----------------------------------------------------------------------------
def _round_up(x, m):
    return (x + m - 1) // m * m


@functools.lru_cache(maxsize=1)
def _vmem_capacity():
    try:
        return int(pltpu.get_tpu_info().vmem_capacity_bytes)
    except Exception:
        return 64 << 20                      # conservative (v7x physical VMEM)


def _compiler_params(est_bytes):
    cap = _vmem_capacity()
    budget = int(min(0.85 * cap, max(int(est_bytes) + (4 << 20), 16 << 20)))
    return pltpu.CompilerParams(dimension_semantics=("parallel",),
                                vmem_limit_bytes=budget)


try:
    _HAS_PIPELINE_MODE = (
        "pipeline_mode" in inspect.signature(pl.BlockSpec).parameters)
except (TypeError, ValueError):
    _HAS_PIPELINE_MODE = True


def _const_spec(shape):
    # Grid-invariant operands (weights / biases / LN params): single-buffered,
    # halving their VMEM footprint (they are DMA'd once and stay resident).
    if _HAS_PIPELINE_MODE:
        try:
            return pl.BlockSpec(shape, lambda i: (0, 0),
                                pipeline_mode=pl.Buffered(1))
        except TypeError:
            pass
    return pl.BlockSpec(shape, lambda i: (0, 0))


def _erf_approx(x):
    # Abramowitz & Stegun 7.1.26, |err| < 1.5e-7 — only exp/mul/add/where, so
    # it lowers cleanly on the VPU/EUP.
    z = jnp.abs(x)
    t = 1.0 / (1.0 + 0.3275911 * z)
    poly = t * (0.254829592 + t * (-0.284496736 + t * (1.421413741
               + t * (-1.453152027 + t * 1.061405429))))
    y = 1.0 - poly * jnp.exp(-z * z)
    return jnp.where(x >= 0, y, -y)


def _gelu(x):
    # exact (erf-based) GELU, matching torch.nn.functional.gelu's default
    return 0.5 * x * (1.0 + _erf_approx(x * _INV_SQRT2))


def _layer_norm_f32(x, gamma, beta, eps):
    mean = jnp.mean(x, axis=-1, keepdims=True)
    c = x - mean
    var = jnp.mean(c * c, axis=-1, keepdims=True)
    return c * jax.lax.rsqrt(var + eps) * gamma + beta


# ----------------------------------------------------------------------------
# kernels
# ----------------------------------------------------------------------------
def _qkv_kernel(x_ref, w_ref, b_ref, q_ref, k_ref, v_ref):
    # one (blk, H) x (H, 3H) MXU pass; the value columns already interleave the
    # pos/sem sub-projections per head so V comes out lane-dense.
    acc = jnp.dot(x_ref[...], w_ref[...], preferred_element_type=jnp.float32)
    acc = acc + b_ref[...].astype(jnp.float32)
    H = q_ref.shape[-1]
    q_ref[...] = acc[:, :H].astype(q_ref.dtype)
    k_ref[...] = acc[:, H:2 * H].astype(k_ref.dtype)
    v_ref[...] = acc[:, 2 * H:].astype(v_ref.dtype)


def _attention_kernel(q_ref, k_ref, v_ref, o_ref, *, num_heads, head_size, scale):
    # One batch element per grid step; heads are split in VMEM so the wrapper
    # needs no (B,S,H)->(B,heads,S,d) HBM transposes.
    # TODO(synk): additive attention_mask / head_mask are not plumbed through
    #             (they default to None in the module); dropout = identity (eval).
    # TODO(synk): for S >~ 1k, switch to an online-softmax KV loop instead of
    #             holding full (S, S) scores per head.
    q = q_ref[...]
    k = k_ref[...]
    v = v_ref[...]
    for h in range(num_heads):
        lo = h * head_size
        hi = lo + head_size
        qh, kh, vh = q[:, lo:hi], k[:, lo:hi], v[:, lo:hi]
        s = jnp.dot(qh, kh.T, preferred_element_type=jnp.float32) * scale
        s = s - jnp.max(s, axis=-1, keepdims=True)
        p = jnp.exp(s)
        # EUP reciprocal instead of an O(S^2) per-element VPU divide
        p = p * pl.reciprocal(jnp.sum(p, axis=-1, keepdims=True), approx=True)
        ctx = jnp.dot(p.astype(vh.dtype), vh, preferred_element_type=jnp.float32)
        o_ref[:, lo:hi] = ctx.astype(o_ref.dtype)


def _selfout_ffn_kernel(ctx_ref, res_ref, w_so_ref, b_so_ref, g1_ref, bt1_ref,
                        w1_ref, b1_ref, w2_ref, b2_ref, g2_ref, bt2_ref,
                        o_ref, *, eps):
    f32 = jnp.float32
    # self-output: (row-permuted) block-diagonal Linear + bias + residual + LN1
    so = jnp.dot(ctx_ref[...], w_so_ref[...], preferred_element_type=f32)
    so = so + b_so_ref[...].astype(f32) + res_ref[...].astype(f32)
    a1 = _layer_norm_f32(so, g1_ref[...].astype(f32), bt1_ref[...].astype(f32), eps)
    # FFN: block-diag (H,4H) + GELU + block-diag (4H,H) + residual + LN2; the
    # 4H intermediate and attn_out never leave VMEM.
    h = jnp.dot(a1.astype(w1_ref.dtype), w1_ref[...], preferred_element_type=f32)
    h = _gelu(h + b1_ref[...].astype(f32))
    y = jnp.dot(h.astype(w2_ref.dtype), w2_ref[...], preferred_element_type=f32)
    y = y + b2_ref[...].astype(f32) + a1
    y = _layer_norm_f32(y, g2_ref[...].astype(f32), bt2_ref[...].astype(f32), eps)
    o_ref[...] = y.astype(o_ref.dtype)


# ----------------------------------------------------------------------------
# pallas_call wrappers
# ----------------------------------------------------------------------------
def _row_tiled_call(kernel, row_args, const_args, out_widths, out_dtype,
                    target_blk, extra_f32_cols=0):
    """Tile `row_args` (all (N, W_i)) over tokens; `const_args` stay resident."""
    n = row_args[0].shape[0]
    steps = int(pl.cdiv(n, target_blk))
    if steps < 2 and n > 8:
        steps = 2            # >=2 grid steps lets "parallel" use both TCs on v7x
    steps = max(steps, 1)
    blk = _round_up(int(pl.cdiv(n, steps)), 8)
    n_pad = steps * blk      # at most 7 wasted rows per grid step
    if n_pad != n:
        row_args = [jnp.pad(a, ((0, n_pad - n), (0, 0))) for a in row_args]

    in_specs = [pl.BlockSpec((blk, a.shape[1]), lambda i: (i, 0)) for a in row_args]
    in_specs += [_const_spec(a.shape) for a in const_args]
    out_specs = tuple(pl.BlockSpec((blk, w), lambda i: (i, 0)) for w in out_widths)
    out_shape = tuple(jax.ShapeDtypeStruct((n_pad, w), out_dtype) for w in out_widths)

    ob = jnp.dtype(out_dtype).itemsize
    est = sum(2 * blk * a.shape[1] * a.dtype.itemsize for a in row_args)
    est += sum(int(a.size) * a.dtype.itemsize for a in const_args)
    est += sum(2 * blk * w * ob for w in out_widths)
    est += blk * extra_f32_cols * 4          # f32 intermediates held in VMEM

    outs = pl.pallas_call(
        kernel,
        out_shape=out_shape,
        grid_spec=pltpu.PrefetchScalarGridSpec(
            num_scalar_prefetch=0, grid=(steps,),
            in_specs=in_specs, out_specs=out_specs),
        compiler_params=_compiler_params(est),
    )(*row_args, *const_args)
    if n_pad != n:
        outs = tuple(o[:n] for o in outs)
    return outs


def _attention_call(q, k, v, *, num_heads, scale):
    B, S, H = q.shape
    head = H // num_heads
    spec = pl.BlockSpec((None, S, H), lambda b: (b, 0, 0))
    est = 8 * S * H * q.dtype.itemsize + 3 * S * S * 4 + 2 * S * H * 4
    kernel = functools.partial(_attention_kernel, num_heads=num_heads,
                               head_size=head, scale=scale)
    return pl.pallas_call(
        kernel,
        out_shape=jax.ShapeDtypeStruct((B, S, H), q.dtype),
        grid_spec=pltpu.PrefetchScalarGridSpec(
            num_scalar_prefetch=0, grid=(B,),
            in_specs=[spec, spec, spec], out_specs=spec),
        compiler_params=_compiler_params(est),
    )(q, k, v)


def _pick_row_block(H, I, act_bytes, w_bytes):
    """Budget-driven row tile: resident weights single-buffered + streamed
    blocks + f32 intermediates must fit ~60% of physical VMEM."""
    cap = _vmem_capacity()
    weights = (H * H + 2 * H * I) * w_bytes + 8 * H * 4
    per_row = 6 * H * act_bytes + (I + 4 * H) * 4
    avail = int(0.6 * cap) - weights
    blk = max(8, min(1024, avail // max(per_row, 1)))
    return max(8, (blk // 8) * 8)


# ----------------------------------------------------------------------------
# parameter construction (hoisted out of the per-call path)
# ----------------------------------------------------------------------------
def make_raw_params(key, hidden_size, num_heads, pos_dim, dtype=jnp.float32):
    """PyTorch-Linear-style (out, in) weights for every sub-module."""
    sem_dim = hidden_size - pos_dim
    head_size = hidden_size // num_heads
    phd = round(head_size * pos_dim / hidden_size)
    shd = round(head_size * sem_dim / hidden_size)
    sizes = {
        "q": (hidden_size, hidden_size), "k": (hidden_size, hidden_size),
        "vp": (num_heads * phd, pos_dim), "vs": (num_heads * shd, sem_dim),
        "so_p": (pos_dim, pos_dim), "so_s": (sem_dim, sem_dim),
        "i_p": (4 * pos_dim, pos_dim), "i_s": (4 * sem_dim, sem_dim),
        "o_p": (pos_dim, 4 * pos_dim), "o_s": (sem_dim, 4 * sem_dim),
    }
    params = {}
    keys = jax.random.split(key, 2 * len(sizes))
    for idx, (name, (dout, din)) in enumerate(sizes.items()):
        lim = 1.0 / math.sqrt(din)
        params["w_" + name] = jax.random.uniform(keys[2 * idx], (dout, din),
                                                 dtype, -lim, lim)
        params["b_" + name] = jax.random.uniform(keys[2 * idx + 1], (dout,),
                                                 dtype, -lim, lim)
    params["ln1_g"] = jnp.ones((hidden_size,), dtype)
    params["ln1_b"] = jnp.zeros((hidden_size,), dtype)
    params["ln2_g"] = jnp.ones((hidden_size,), dtype)
    params["ln2_b"] = jnp.zeros((hidden_size,), dtype)
    return params


def prepare_fused_params(raw, hidden_size, num_heads, pos_dim,
                         param_dtype=jnp.float32):
    """Build fused weights ONCE.  The value weight interleaves the pos/sem
    sub-projections per head; the self-output weight is row-permuted so it
    consumes that fused context layout directly (bit-equivalent to the
    split-then-concat PyTorch path).  `param_dtype=jnp.bfloat16` enables the
    native-rate MXU path (biases / LayerNorm params stay f32)."""
    H, f32 = hidden_size, jnp.float32
    sem_dim = H - pos_dim
    head = H // num_heads
    phd = round(head * pos_dim / H)
    shd = round(head * sem_dim / H)
    assert num_heads * (phd + shd) == H, "context width must equal hidden size"
    P = num_heads * phd

    # fused [Q | K | V] with V already per-head [pos|sem] interleaved
    w_qkv = jnp.zeros((H, 3 * H), f32)
    w_qkv = w_qkv.at[:, :H].set(raw["w_q"].astype(f32).T)
    w_qkv = w_qkv.at[:, H:2 * H].set(raw["w_k"].astype(f32).T)
    b_v = jnp.zeros((H,), f32)
    w_vp, w_vs = raw["w_vp"].astype(f32), raw["w_vs"].astype(f32)
    b_vp, b_vs = raw["b_vp"].astype(f32), raw["b_vs"].astype(f32)
    for h in range(num_heads):
        col = 2 * H + h * head
        w_qkv = w_qkv.at[:pos_dim, col:col + phd].set(w_vp[h * phd:(h + 1) * phd, :].T)
        w_qkv = w_qkv.at[pos_dim:, col + phd:col + head].set(w_vs[h * shd:(h + 1) * shd, :].T)
        b_v = b_v.at[h * head:h * head + phd].set(b_vp[h * phd:(h + 1) * phd])
        b_v = b_v.at[h * head + phd:(h + 1) * head].set(b_vs[h * shd:(h + 1) * shd])
    b_qkv = jnp.concatenate([raw["b_q"].astype(f32), raw["b_k"].astype(f32), b_v])

    # self-output (block-diagonal in the original [pos ctx | sem ctx] basis),
    # then row-permuted into the fused per-head context layout.
    w_so = jnp.zeros((H, H), f32)
    w_so = w_so.at[:pos_dim, :pos_dim].set(raw["w_so_p"].astype(f32).T)
    w_so = w_so.at[pos_dim:, pos_dim:].set(raw["w_so_s"].astype(f32).T)
    perm = []
    for h in range(num_heads):
        perm.extend(range(h * phd, (h + 1) * phd))
        perm.extend(range(P + h * shd, P + (h + 1) * shd))
    w_so = w_so[jnp.asarray(perm, dtype=jnp.int32), :]
    b_so = jnp.concatenate([raw["b_so_p"], raw["b_so_s"]]).astype(f32)

    ip, isem = 4 * pos_dim, 4 * sem_dim
    w1 = jnp.zeros((H, ip + isem), f32)
    w1 = w1.at[:pos_dim, :ip].set(raw["w_i_p"].astype(f32).T)
    w1 = w1.at[pos_dim:, ip:].set(raw["w_i_s"].astype(f32).T)
    b1 = jnp.concatenate([raw["b_i_p"], raw["b_i_s"]]).astype(f32)

    w2 = jnp.zeros((ip + isem, H), f32)
    w2 = w2.at[:ip, :pos_dim].set(raw["w_o_p"].astype(f32).T)
    w2 = w2.at[ip:, pos_dim:].set(raw["w_o_s"].astype(f32).T)
    b2 = jnp.concatenate([raw["b_o_p"], raw["b_o_s"]]).astype(f32)

    cvt = lambda w: w.astype(param_dtype)
    return {
        "w_qkv": cvt(w_qkv), "b_qkv": b_qkv.reshape(1, -1),
        "w_so": cvt(w_so), "b_so": b_so.reshape(1, -1),
        "ln1_g": raw["ln1_g"].astype(f32).reshape(1, -1),
        "ln1_b": raw["ln1_b"].astype(f32).reshape(1, -1),
        "w1": cvt(w1), "b1": b1.reshape(1, -1),
        "w2": cvt(w2), "b2": b2.reshape(1, -1),
        "ln2_g": raw["ln2_g"].astype(f32).reshape(1, -1),
        "ln2_b": raw["ln2_b"].astype(f32).reshape(1, -1),
    }


# ----------------------------------------------------------------------------
# full layer forward
# ----------------------------------------------------------------------------
def bert_dim_pos_extrapol_layer(hidden_states, fused, *, num_heads, pos_dim,
                                eps=1e-12, blk_rows=None):
    """hidden_states: (B, S, H) -> (B, S, H) (eval-mode forward)."""
    B, S, H = hidden_states.shape
    N = B * S
    head = H // num_heads
    sem_dim = H - pos_dim
    phd = round(head * pos_dim / H)
    shd = round(head * sem_dim / H)
    assert num_heads * (phd + shd) == H, "context width must equal hidden size"

    act_dtype = hidden_states.dtype
    I = fused["w1"].shape[1]
    if blk_rows is None:
        cap = _vmem_capacity()
        base = 512 if cap >= (96 << 20) else 256      # bigger tiles on v5e/v6e
        blk_rows = min(base, _pick_row_block(
            H, I, jnp.dtype(act_dtype).itemsize, fused["w1"].dtype.itemsize))

    x2 = hidden_states.reshape(N, H)

    # --- 1. fused Q / K / V projection (3 lane-dense outputs, no XLA slices) --
    q, k, v = _row_tiled_call(
        _qkv_kernel, [x2], [fused["w_qkv"], fused["b_qkv"]],
        out_widths=(H, H, H), out_dtype=act_dtype,
        target_blk=blk_rows, extra_f32_cols=3 * H)

    # --- 2. attention (grid over batch; heads split in VMEM) -----------------
    scale = 1.0 / math.sqrt(head)
    ctx = _attention_call(q.reshape(B, S, H), k.reshape(B, S, H),
                          v.reshape(B, S, H), num_heads=num_heads, scale=scale)

    # --- 3. fused self-output + LN1 + FFN(GELU) + LN2 ------------------------
    (out,) = _row_tiled_call(
        functools.partial(_selfout_ffn_kernel, eps=eps),
        [ctx.reshape(N, H), x2],
        [fused["w_so"], fused["b_so"], fused["ln1_g"], fused["ln1_b"],
         fused["w1"], fused["b1"], fused["w2"], fused["b2"],
         fused["ln2_g"], fused["ln2_b"]],
        out_widths=(H,), out_dtype=act_dtype,
        target_blk=blk_rows, extra_f32_cols=I + 4 * H)

    return out.reshape(B, S, H)


# ----------------------------------------------------------------------------
# pure-JAX reference mirroring the PyTorch forward (eval mode)
# ----------------------------------------------------------------------------
def reference_layer(hidden_states, raw, *, num_heads, pos_dim, eps=1e-12):
    B, S, H = hidden_states.shape
    head_size = H // num_heads
    sem_dim = H - pos_dim
    phd = round(head_size * pos_dim / H)
    shd = round(head_size * sem_dim / H)
    f32 = jnp.float32
    hs = hidden_states.astype(f32)

    lin = lambda x, w, b: x @ w.astype(f32).T + b.astype(f32)
    split = lambda x, d: x.reshape(B, S, num_heads, d).transpose(0, 2, 1, 3)
    merge = lambda x, d: x.transpose(0, 2, 1, 3).reshape(B, S, num_heads * d)

    q = split(lin(hs, raw["w_q"], raw["b_q"]), head_size)
    k = split(lin(hs, raw["w_k"], raw["b_k"]), head_size)
    scores = jnp.einsum("bhqd,bhkd->bhqk", q, k) / math.sqrt(head_size)
    probs = jax.nn.softmax(scores, axis=-1)

    v_pos = split(lin(hs[..., :pos_dim], raw["w_vp"], raw["b_vp"]), phd)
    v_sem = split(lin(hs[..., pos_dim:], raw["w_vs"], raw["b_vs"]), shd)
    context = jnp.concatenate(
        [merge(jnp.einsum("bhqk,bhkd->bhqd", probs, v_pos), phd),
         merge(jnp.einsum("bhqk,bhkd->bhqd", probs, v_sem), shd)], -1)

    def ln(x, g, b):
        m = jnp.mean(x, -1, keepdims=True)
        v = jnp.mean((x - m) ** 2, -1, keepdims=True)
        return (x - m) * jax.lax.rsqrt(v + eps) * g.astype(f32) + b.astype(f32)

    so = jnp.concatenate(
        [lin(context[..., :pos_dim], raw["w_so_p"], raw["b_so_p"]),
         lin(context[..., pos_dim:], raw["w_so_s"], raw["b_so_s"])], -1)
    attn_out = ln(so + hs, raw["ln1_g"], raw["ln1_b"])

    gelu_exact = lambda x: 0.5 * x * (1.0 + jax.lax.erf(x * _INV_SQRT2))
    inter = jnp.concatenate(
        [gelu_exact(lin(attn_out[..., :pos_dim], raw["w_i_p"], raw["b_i_p"])),
         gelu_exact(lin(attn_out[..., pos_dim:], raw["w_i_s"], raw["b_i_s"]))], -1)
    ip = 4 * pos_dim
    out = jnp.concatenate(
        [lin(inter[..., :ip], raw["w_o_p"], raw["b_o_p"]),
         lin(inter[..., ip:], raw["w_o_s"], raw["b_o_s"])], -1)
    return ln(out + attn_out, raw["ln2_g"], raw["ln2_b"])


if __name__ == "__main__":
    # Small config consistent with the module: hidden=32, heads=4, pos_dim=8.
    batch, seq, hidden, num_heads, pos_dim = 2, 8, 32, 4, 8
    eps = 1e-12

    key = jax.random.PRNGKey(0)
    k_x, k_p = jax.random.split(key)
    x = jax.random.normal(k_x, (batch, seq, hidden), jnp.float32)
    raw = make_raw_params(k_p, hidden, num_heads, pos_dim)
    ref = reference_layer(x, raw, num_heads=num_heads, pos_dim=pos_dim, eps=eps)

    fwd = jax.jit(functools.partial(bert_dim_pos_extrapol_layer,
                                    num_heads=num_heads, pos_dim=pos_dim,
                                    eps=eps))

    # f32 path: correctness check against the PyTorch-mirroring reference
    # (tolerance allows the approximate EUP reciprocal in the softmax).
    fused32 = prepare_fused_params(raw, hidden, num_heads, pos_dim,
                                   param_dtype=jnp.float32)
    out = jax.block_until_ready(fwd(x, fused32))
    assert out.shape == (batch, seq, hidden)
    err = float(jnp.max(jnp.abs(out - ref)))
    assert jnp.allclose(out, ref, atol=5e-3, rtol=5e-3), f"f32 max abs err {err}"

    # bf16 path (native-rate MXU weights/activations): loose-tolerance smoke run.
    fused16 = prepare_fused_params(raw, hidden, num_heads, pos_dim,
                                   param_dtype=jnp.bfloat16)
    out16 = jax.block_until_ready(fwd(x.astype(jnp.bfloat16), fused16))
    err16 = float(jnp.max(jnp.abs(out16.astype(jnp.float32) - ref)))
    assert err16 < 0.2, f"bf16 max abs err {err16}"

    print("KERNEL_OK")
</pallas_src>

<mosaic_0001>
module attributes {stable_mosaic.version = 11 : i64} {
  func.func @_qkv_kernel(%arg0: i32, %arg1: memref<8x32xf32, #tpu.memory_space<vmem>>, %arg2: memref<32x96xf32, #tpu.memory_space<vmem>>, %arg3: memref<1x96xf32, #tpu.memory_space<vmem>>, %arg4: memref<8x32xf32, #tpu.memory_space<vmem>>, %arg5: memref<8x32xf32, #tpu.memory_space<vmem>>, %arg6: memref<8x32xf32, #tpu.memory_space<vmem>>) attributes {dimension_semantics = [#tpu.dimension_semantics<parallel>], iteration_bounds = array<i64: 2>, scalar_prefetch = 0 : i64, scratch_operands = 0 : i64, tpu.core_type = #tpu.core_type<tc>, window_params = [{transform_indices = @transform_0, window_bounds = array<i64: 8, 32>}, {pipeline_mode = #tpu.pipeline_mode<synchronous>, transform_indices = @transform_1, window_bounds = array<i64: 32, 96>}, {pipeline_mode = #tpu.pipeline_mode<synchronous>, transform_indices = @transform_2, window_bounds = array<i64: 1, 96>}, {transform_indices = @transform_3, window_bounds = array<i64: 8, 32>}, {transform_indices = @transform_4, window_bounds = array<i64: 8, 32>}, {transform_indices = @transform_5, window_bounds = array<i64: 8, 32>}]} {
    %c0 = arith.constant 0 : index
    %c0_0 = arith.constant 0 : index
    %0 = vector.load %arg1[%c0, %c0_0] : memref<8x32xf32, #tpu.memory_space<vmem>>, vector<8x32xf32>
    %c0_1 = arith.constant 0 : index
    %c0_2 = arith.constant 0 : index
    %1 = vector.load %arg2[%c0_1, %c0_2] : memref<32x96xf32, #tpu.memory_space<vmem>>, vector<32x96xf32>
    %cst = arith.constant dense<0.000000e+00> : vector<8x96xf32>
    %2 = tpu.matmul %0, %1, %cst {dimension_numbers = #tpu.dot_dimension_numbers<[1], [0], [0], [1], [0, 0, 1, 1], [], []>} : vector<8x32xf32>, vector<32x96xf32>, vector<8x96xf32> -> vector<8x96xf32>
    %c0_3 = arith.constant 0 : index
    %c0_4 = arith.constant 0 : index
    %3 = vector.load %arg3[%c0_3, %c0_4] : memref<1x96xf32, #tpu.memory_space<vmem>>, vector<1x96xf32>
    %4 = vector.broadcast %3 : vector<1x96xf32> to vector<8x96xf32>
    %5 = arith.addf %2, %4 : vector<8x96xf32>
    %6 = vector.extract_strided_slice %5 {offsets = [0, 0], sizes = [8, 32], strides = [1, 1]} : vector<8x96xf32> to vector<8x32xf32>
    %c0_5 = arith.constant 0 : index
    %c0_6 = arith.constant 0 : index
    %7 = vector.load %arg4[%c0_5, %c0_6] : memref<8x32xf32, #tpu.memory_space<vmem>>, vector<8x32xf32>
    tpu.vector_store %arg4[%c0_5, %c0_6], %6 {strides = array<i32>} : memref<8x32xf32, #tpu.memory_space<vmem>>, vector<8x32xf32>,
    %8 = vector.extract_strided_slice %5 {offsets = [0, 32], sizes = [8, 32], strides = [1, 1]} : vector<8x96xf32> to vector<8x32xf32>
    %c0_7 = arith.constant 0 : index
    %c0_8 = arith.constant 0 : index
    %9 = vector.load %arg5[%c0_7, %c0_8] : memref<8x32xf32, #tpu.memory_space<vmem>>, vector<8x32xf32>
    tpu.vector_store %arg5[%c0_7, %c0_8], %8 {strides = array<i32>} : memref<8x32xf32, #tpu.memory_space<vmem>>, vector<8x32xf32>,
    %10 = vector.extract_strided_slice %5 {offsets = [0, 64], sizes = [8, 32], strides = [1, 1]} : vector<8x96xf32> to vector<8x32xf32>
    %c0_9 = arith.constant 0 : index
    %c0_10 = arith.constant 0 : index
    %11 = vector.load %arg6[%c0_9, %c0_10] : memref<8x32xf32, #tpu.memory_space<vmem>>, vector<8x32xf32>
    tpu.vector_store %arg6[%c0_9, %c0_10], %10 {strides = array<i32>} : memref<8x32xf32, #tpu.memory_space<vmem>>, vector<8x32xf32>,
    return
  }
  func.func @transform_0(%arg0: i32) -> (i32, i32) {
    %c0_i32 = arith.constant 0 : i32
    %c0_i32_0 = arith.constant 0 : i32
    return %arg0, %c0_i32 : i32, i32
  }
  func.func @transform_1(%arg0: i32) -> (i32, i32) {
    %c0_i32 = arith.constant 0 : i32
    %c0_i32_0 = arith.constant 0 : i32
    %c0_i32_1 = arith.constant 0 : i32
    return %c0_i32, %c0_i32_0 : i32, i32
  }
  func.func @transform_2(%arg0: i32) -> (i32, i32) {
    %c0_i32 = arith.constant 0 : i32
    %c0_i32_0 = arith.constant 0 : i32
    %c0_i32_1 = arith.constant 0 : i32
    return %c0_i32, %c0_i32_0 : i32, i32
  }
  func.func @transform_3(%arg0: i32) -> (i32, i32) {
    %c0_i32 = arith.constant 0 : i32
    %c0_i32_0 = arith.constant 0 : i32
    return %arg0, %c0_i32 : i32, i32
  }
  func.func @transform_4(%arg0: i32) -> (i32, i32) {
    %c0_i32 = arith.constant 0 : i32
    %c0_i32_0 = arith.constant 0 : i32
    return %arg0, %c0_i32 : i32, i32
  }
  func.func @transform_5(%arg0: i32) -> (i32, i32) {
    %c0_i32 = arith.constant 0 : i32
    %c0_i32_0 = arith.constant 0 : i32
    return %arg0, %c0_i32 : i32, i32
  }
}

module attributes {stable_mosaic.version = 11 : i64} {
  func.func @_selfout_ffn_kernel(%arg0: i32, %arg1: memref<8x32xf32, #tpu.memory_space<vmem>>, %arg2: memref<8x32xf32, #tpu.memory_space<vmem>>, %arg3: memref<32x32xf32, #tpu.memory_space<vmem>>, %arg4: memref<1x32xf32, #tpu.memory_space<vmem>>, %arg5: memref<1x32xf32, #tpu.memory_space<vmem>>, %arg6: memref<1x32xf32, #tpu.memory_space<vmem>>, %arg7: memref<32x128xf32, #tpu.memory_space<vmem>>, %arg8: memref<1x128xf32, #tpu.memory_space<vmem>>, %arg9: memref<128x32xf32, #tpu.memory_space<vmem>>, %arg10: memref<1x32xf32, #tpu.memory_space<vmem>>, %arg11: memref<1x32xf32, #tpu.memory_space<vmem>>, %arg12: memref<1x32xf32, #tpu.memory_space<vmem>>, %arg13: memref<8x32xf32, #tpu.memory_space<vmem>>) attributes {dimension_semantics = [#tpu.dimension_semantics<parallel>], iteration_bounds = array<i64: 2>, scalar_prefetch = 0 : i64, scratch_operands = 0 : i64, tpu.core_type = #tpu.core_type<tc>, window_params = [{transform_indices = @transform_0, window_bounds = array<i64: 8, 32>}, {transform_indices = @transform_1, window_bounds = array<i64: 8, 32>}, {pipeline_mode = #tpu.pipeline_mode<synchronous>, transform_indices = @transform_2, window_bounds = array<i64: 32, 32>}, {pipeline_mode = #tpu.pipeline_mode<synchronous>, transform_indices = @transform_3, window_bounds = array<i64: 1, 32>}, {pipeline_mode = #tpu.pipeline_mode<synchronous>, transform_indices = @transform_4, window_bounds = array<i64: 1, 32>}, {pipeline_mode = #tpu.pipeline_mode<synchronous>, transform_indices = @transform_5, window_bounds = array<i64: 1, 32>}, {pipeline_mode = #tpu.pipeline_mode<synchronous>, transform_indices = @transform_6, window_bounds = array<i64: 32, 128>}, {pipeline_mode = #tpu.pipeline_mode<synchronous>, transform_indices = @transform_7, window_bounds = array<i64: 1, 128>}, {pipeline_mode = #tpu.pipeline_mode<synchronous>, transform_indices = @transform_8, window_bounds = array<i64: 128, 32>}, {pipeline_mode = #tpu.pipeline_mode<synchronous>, transform_indices = @transform_9, window_bounds = array<i64: 1, 32>}, {pipeline_mode = #tpu.pipeline_mode<synchronous>, transform_indices = @transform_10, window_bounds = array<i64: 1, 32>}, {pipeline_mode = #tpu.pipeline_mode<synchronous>, transform_indices = @transform_11, window_bounds = array<i64: 1, 32>}, {transform_indices = @transform_12, window_bounds = array<i64: 8, 32>}]} {
    %c0 = arith.constant 0 : index
    %c0_0 = arith.constant 0 : index
    %0 = vector.load %arg1[%c0, %c0_0] : memref<8x32xf32, #tpu.memory_space<vmem>>, vector<8x32xf32>
    %c0_1 = arith.constant 0 : index
    %c0_2 = arith.constant 0 : index
    %1 = vector.load %arg3[%c0_1, %c0_2] : memref<32x32xf32, #tpu.memory_space<vmem>>, vector<32x32xf32>
    %cst = arith.constant dense<0.000000e+00> : vector<8x32xf32>
    %2 = tpu.matmul %0, %1, %cst {dimension_numbers = #tpu.dot_dimension_numbers<[1], [0], [0], [1], [0, 0, 1, 1], [], []>} : vector<8x32xf32>, vector<32x32xf32>, vector<8x32xf32> -> vector<8x32xf32>
    %c0_3 = arith.constant 0 : index
    %c0_4 = arith.constant 0 : index
    %3 = vector.load %arg4[%c0_3, %c0_4] : memref<1x32xf32, #tpu.memory_space<vmem>>, vector<1x32xf32>
    %4 = vector.broadcast %3 : vector<1x32xf32> to vector<8x32xf32>
    %5 = arith.addf %2, %4 : vector<8x32xf32>
    %c0_5 = arith.constant 0 : index
    %c0_6 = arith.constant 0 : index
    %6 = vector.load %arg2[%c0_5, %c0_6] : memref<8x32xf32, #tpu.memory_space<vmem>>, vector<8x32xf32>
    %7 = arith.addf %5, %6 : vector<8x32xf32>
    %c0_7 = arith.constant 0 : index
    %c0_8 = arith.constant 0 : index
    %8 = vector.load %arg5[%c0_7, %c0_8] : memref<1x32xf32, #tpu.memory_space<vmem>>, vector<1x32xf32>
    %c0_9 = arith.constant 0 : index
    %c0_10 = arith.constant 0 : index
    %9 = vector.load %arg6[%c0_9, %c0_10] : memref<1x32xf32, #tpu.memory_space<vmem>>, vector<1x32xf32>
    %cst_11 = arith.constant dense<0.000000e+00> : vector<8xf32>
    %10 = vector.multi_reduction <add>, %7, %cst_11 [1] : vector<8x32xf32> to vector<8xf32>
    %11 = vector.shape_cast %10 : vector<8xf32> to vector<8x1xf32>
    %cst_12 = arith.constant 3.200000e+01 : f32
    %12 = vector.broadcast %cst_12 : f32 to vector<8x1xf32>
    %13 = arith.divf %11, %12 : vector<8x1xf32>
    %14 = vector.broadcast %13 : vector<8x1xf32> to vector<8x32xf32>
    %15 = arith.subf %7, %14 : vector<8x32xf32>
    %16 = arith.mulf %15, %15 : vector<8x32xf32>
    %cst_13 = arith.constant dense<0.000000e+00> : vector<8xf32>
    %17 = vector.multi_reduction <add>, %16, %cst_13 [1] : vector<8x32xf32> to vector<8xf32>
    %18 = vector.shape_cast %17 : vector<8xf32> to vector<8x1xf32>
    %cst_14 = arith.constant 3.200000e+01 : f32
    %19 = vector.broadcast %cst_14 : f32 to vector<8x1xf32>
    %20 = arith.divf %18, %19 : vector<8x1xf32>
    %cst_15 = arith.constant 9.99999996E-13 : f32
    %21 = vector.broadcast %cst_15 : f32 to vector<8x1xf32>
    %22 = arith.addf %20, %21 : vector<8x1xf32>
    %23 = math.rsqrt %22 : vector<8x1xf32>
    %24 = vector.broadcast %23 : vector<8x1xf32> to vector<8x32xf32>
    %25 = arith.mulf %15, %24 : vector<8x32xf32>
    %26 = vector.broadcast %8 : vector<1x32xf32> to vector<8x32xf32>
    %27 = arith.mulf %25, %26 : vector<8x32xf32>
    %28 = vector.broadcast %9 : vector<1x32xf32> to vector<8x32xf32>
    %29 = arith.addf %27, %28 : vector<8x32xf32>
    %c0_16 = arith.constant 0 : index
    %c0_17 = arith.constant 0 : index
    %30 = vector.load %arg7[%c0_16, %c0_17] : memref<32x128xf32, #tpu.memory_space<vmem>>, vector<32x128xf32>
    %cst_18 = arith.constant dense<0.000000e+00> : vector<8x128xf32>
    %31 = tpu.matmul %29, %30, %cst_18 {dimension_numbers = #tpu.dot_dimension_numbers<[1], [0], [0], [1], [0, 0, 1, 1], [], []>} : vector<8x32xf32>, vector<32x128xf32>, vector<8x128xf32> -> vector<8x128xf32>
    %c0_19 = arith.constant 0 : index
    %c0_20 = arith.constant 0 : index
    %32 = vector.load %arg8[%c0_19, %c0_20] : memref<1x128xf32, #tpu.memory_space<vmem>>, vector<1x128xf32>
    %33 = vector.broadcast %32 : vector<1x128xf32> to vector<8x128xf32>
    %34 = arith.addf %31, %33 : vector<8x128xf32>
    %cst_21 = arith.constant 5.000000e-01 : f32
    %35 = vector.broadcast %cst_21 : f32 to vector<8x128xf32>
    %36 = arith.mulf %35, %34 : vector<8x128xf32>
    %cst_22 = arith.constant 0.707106769 : f32
    %37 = vector.broadcast %cst_22 : f32 to vector<8x128xf32>
    %38 = arith.mulf %34, %37 : vector<8x128xf32>
    %39 = math.absf %38 : vector<8x128xf32>
    %cst_23 = arith.constant 0.327591091 : f32
    %40 = vector.broadcast %cst_23 : f32 to vector<8x128xf32>
    %41 = arith.mulf %40, %39 : vector<8x128xf32>
    %cst_24 = arith.constant 1.000000e+00 : f32
    %42 = vector.broadcast %cst_24 : f32 to vector<8x128xf32>
    %43 = arith.addf %42, %41 : vector<8x128xf32>
    %cst_25 = arith.constant 1.000000e+00 : f32
    %44 = vector.broadcast %cst_25 : f32 to vector<8x128xf32>
    %45 = arith.divf %44, %43 : vector<8x128xf32>
    %cst_26 = arith.constant 1.06140542 : f32
    %46 = vector.broadcast %cst_26 : f32 to vector<8x128xf32>
    %47 = arith.mulf %45, %46 : vector<8x128xf32>
    %cst_27 = arith.constant -1.45315206 : f32
    %48 = vector.broadcast %cst_27 : f32 to vector<8x128xf32>
    %49 = arith.addf %48, %47 : vector<8x128xf32>
    %50 = arith.mulf %45, %49 : vector<8x128xf32>
    %cst_28 = arith.constant 1.42141378 : f32
    %51 = vector.broadcast %cst_28 : f32 to vector<8x128xf32>
    %52 = arith.addf %51, %50 : vector<8x128xf32>
    %53 = arith.mulf %45, %52 : vector<8x128xf32>
    %cst_29 = arith.constant -0.284496725 : f32
    %54 = vector.broadcast %cst_29 : f32 to vector<8x128xf32>
    %55 = arith.addf %54, %53 : vector<8x128xf32>
    %56 = arith.mulf %45, %55 : vector<8x128xf32>
    %cst_30 = arith.constant 0.254829586 : f32
    %57 = vector.broadcast %cst_30 : f32 to vector<8x128xf32>
    %58 = arith.addf %57, %56 : vector<8x128xf32>
    %59 = arith.mulf %45, %58 : vector<8x128xf32>
    %cst_31 = arith.constant 0.000000e+00 : f32
    %60 = vector.broadcast %cst_31 : f32 to vector<8x128xf32>
    %61 = arith.subf %60, %39 : vector<8x128xf32>
    %62 = arith.mulf %61, %39 : vector<8x128xf32>
    %63 = math.exp %62 : vector<8x128xf32>
    %64 = arith.mulf %59, %63 : vector<8x128xf32>
    %cst_32 = arith.constant 1.000000e+00 : f32
    %65 = vector.broadcast %cst_32 : f32 to vector<8x128xf32>
    %66 = arith.subf %65, %64 : vector<8x128xf32>
    %cst_33 = arith.constant 0.000000e+00 : f32
    %67 = vector.broadcast %cst_33 : f32 to vector<8x128xf32>
    %68 = arith.cmpf oge, %38, %67 : vector<8x128xf32>
    %cst_34 = arith.constant 0.000000e+00 : f32
    %69 = vector.broadcast %cst_34 : f32 to vector<8x128xf32>
    %70 = arith.subf %69, %66 : vector<8x128xf32>
    %71 = arith.select %68, %66, %70 : vector<8x128xi1>, vector<8x128xf32>
    %cst_35 = arith.constant 1.000000e+00 : f32
    %72 = vector.broadcast %cst_35 : f32 to vector<8x128xf32>
    %73 = arith.addf %72, %71 : vector<8x128xf32>
    %74 = arith.mulf %36, %73 : vector<8x128xf32>
    %c0_36 = arith.constant 0 : index
    %c0_37 = arith.constant 0 : index
    %75 = vector.load %arg9[%c0_36, %c0_37] : memref<128x32xf32, #tpu.memory_space<vmem>>, vector<128x32xf32>
    %cst_38 = arith.constant dense<0.000000e+00> : vector<8x32xf32>
    %76 = tpu.matmul %74, %75, %cst_38 {dimension_numbers = #tpu.dot_dimension_numbers<[1], [0], [0], [1], [0, 0, 1, 1], [], []>} : vector<8x128xf32>, vector<128x32xf32>, vector<8x32xf32> -> vector<8x32xf32>
    %c0_39 = arith.constant 0 : index
    %c0_40 = arith.constant 0 : index
    %77 = vector.load %arg10[%c0_39, %c0_40] : memref<1x32xf32, #tpu.memory_space<vmem>>, vector<1x32xf32>
    %78 = vector.broadcast %77 : vector<1x32xf32> to vector<8x32xf32>
    %79 = arith.addf %76, %78 : vector<8x32xf32>
    %80 = arith.addf %79, %29 : vector<8x32xf32>
    %c0_41 = arith.constant 0 : index
    %c0_42 = arith.constant 0 : index
    %81 = vector.load %arg11[%c0_41, %c0_42] : memref<1x32xf32, #tpu.memory_space<vmem>>, vector<1x32xf32>
    %c0_43 = arith.constant 0 : index
    %c0_44 = arith.constant 0 : index
    %82 = vector.load %arg12[%c0_43, %c0_44] : memref<1x32xf32, #tpu.memory_space<vmem>>, vector<1x32xf32>
    %cst_45 = arith.constant dense<0.000000e+00> : vector<8xf32>
    %83 = vector.multi_reduction <add>, %80, %cst_45 [1] : vector<8x32xf32> to vector<8xf32>
    %84 = vector.shape_cast %83 : vector<8xf32> to vector<8x1xf32>
    %cst_46 = arith.constant 3.200000e+01 : f32
    %85 = vector.broadcast %cst_46 : f32 to vector<8x1xf32>
    %86 = arith.divf %84, %85 : vector<8x1xf32>
    %87 = vector.broadcast %86 : vector<8x1xf32> to vector<8x32xf32>
    %88 = arith.subf %80, %87 : vector<8x32xf32>
    %89 = arith.mulf %88, %88 : vector<8x32xf32>
    %cst_47 = arith.constant dense<0.000000e+00> : vector<8xf32>
    %90 = vector.multi_reduction <add>, %89, %cst_47 [1] : vector<8x32xf32> to vector<8xf32>
    %91 = vector.shape_cast %90 : vector<8xf32> to vector<8x1xf32>
    %cst_48 = arith.constant 3.200000e+01 : f32
    %92 = vector.broadcast %cst_48 : f32 to vector<8x1xf32>
    %93 = arith.divf %91, %92 : vector<8x1xf32>
    %cst_49 = arith.constant 9.99999996E-13 : f32
    %94 = vector.broadcast %cst_49 : f32 to vector<8x1xf32>
    %95 = arith.addf %93, %94 : vector<8x1xf32>
    %96 = math.rsqrt %95 : vector<8x1xf32>
    %97 = vector.broadcast %96 : vector<8x1xf32> to vector<8x32xf32>
    %98 = arith.mulf %88, %97 : vector<8x32xf32>
    %99 = vector.broadcast %81 : vector<1x32xf32> to vector<8x32xf32>
    %100 = arith.mulf %98, %99 : vector<8x32xf32>
    %101 = vector.broadcast %82 : vector<1x32xf32> to vector<8x32xf32>
    %102 = arith.addf %100, %101 : vector<8x32xf32>
    %c0_50 = arith.constant 0 : index
    %c0_51 = arith.constant 0 : index
    %103 = vector.load %arg13[%c0_50, %c0_51] : memref<8x32xf32, #tpu.memory_space<vmem>>, vector<8x32xf32>
    tpu.vector_store %arg13[%c0_50, %c0_51], %102 {strides = array<i32>} : memref<8x32xf32, #tpu.memory_space<vmem>>, vector<8x32xf32>,
    return
  }
  func.func @transform_0(%arg0: i32) -> (i32, i32) {
    %c0_i32 = arith.constant 0 : i32
    %c0_i32_0 = arith.constant 0 : i32
    return %arg0, %c0_i32 : i32, i32
  }
  func.func @transform_1(%arg0: i32) -> (i32, i32) {
    %c0_i32 = arith.constant 0 : i32
    %c0_i32_0 = arith.constant 0 : i32
    return %arg0, %c0_i32 : i32, i32
  }
  func.func @transform_2(%arg0: i32) -> (i32, i32) {
    %c0_i32 = arith.constant 0 : i32
    %c0_i32_0 = arith.constant 0 : i32
    %c0_i32_1 = arith.constant 0 : i32
    return %c0_i32, %c0_i32_0 : i32, i32
  }
  func.func @transform_3(%arg0: i32) -> (i32, i32) {
    %c0_i32 = arith.constant 0 : i32
    %c0_i32_0 = arith.constant 0 : i32
    %c0_i32_1 = arith.constant 0 : i32
    return %c0_i32, %c0_i32_0 : i32, i32
  }
  func.func @transform_4(%arg0: i32) -> (i32, i32) {
    %c0_i32 = arith.constant 0 : i32
    %c0_i32_0 = arith.constant 0 : i32
    %c0_i32_1 = arith.constant 0 : i32
    return %c0_i32, %c0_i32_0 : i32, i32
  }
  func.func @transform_5(%arg0: i32) -> (i32, i32) {
    %c0_i32 = arith.constant 0 : i32
    %c0_i32_0 = arith.constant 0 : i32
    %c0_i32_1 = arith.constant 0 : i32
    return %c0_i32, %c0_i32_0 : i32, i32
  }
  func.func @transform_6(%arg0: i32) -> (i32, i32) {
    %c0_i32 = arith.constant 0 : i32
    %c0_i32_0 = arith.constant 0 : i32
    %c0_i32_1 = arith.constant 0 : i32
    return %c0_i32, %c0_i32_0 : i32, i32
  }
  func.func @transform_7(%arg0: i32) -> (i32, i32) {
    %c0_i32 = arith.constant 0 : i32
    %c0_i32_0 = arith.constant 0 : i32
    %c0_i32_1 = arith.constant 0 : i32
    return %c0_i32, %c0_i32_0 : i32, i32
  }
  func.func @transform_8(%arg0: i32) -> (i32, i32) {
    %c0_i32 = arith.constant 0 : i32
    %c0_i32_0 = arith.constant 0 : i32
    %c0_i32_1 = arith.constant 0 : i32
    return %c0_i32, %c0_i32_0 : i32, i32
  }
  func.func @transform_9(%arg0: i32) -> (i32, i32) {
    %c0_i32 = arith.constant 0 : i32
    %c0_i32_0 = arith.constant 0 : i32
    %c0_i32_1 = arith.constant 0 : i32
    return %c0_i32, %c0_i32_0 : i32, i32
  }
  func.func @transform_10(%arg0: i32) -> (i32, i32) {
    %c0_i32 = arith.constant 0 : i32
    %c0_i32_0 = arith.constant 0 : i32
    %c0_i32_1 = arith.constant 0 : i32
    return %c0_i32, %c0_i32_0 : i32, i32
  }
  func.func @transform_11(%arg0: i32) -> (i32, i32) {
    %c0_i32 = arith.constant 0 : i32
    %c0_i32_0 = arith.constant 0 : i32
    %c0_i32_1 = arith.constant 0 : i32
    return %c0_i32, %c0_i32_0 : i32, i32
  }
  func.func @transform_12(%arg0: i32) -> (i32, i32) {
    %c0_i32 = arith.constant 0 : i32
    %c0_i32_0 = arith.constant 0 : i32
    return %arg0, %c0_i32 : i32, i32
  }
}

module attributes {stable_mosaic.version = 11 : i64} {
  func.func @_attention_kernel(%arg0: i32, %arg1: memref<1x8x32xf32, #tpu.memory_space<vmem>>, %arg2: memref<1x8x32xf32, #tpu.memory_space<vmem>>, %arg3: memref<1x8x32xf32, #tpu.memory_space<vmem>>, %arg4: memref<1x8x32xf32, #tpu.memory_space<vmem>>) attributes {dimension_semantics = [#tpu.dimension_semantics<parallel>], iteration_bounds = array<i64: 2>, scalar_prefetch = 0 : i64, scratch_operands = 0 : i64, tpu.core_type = #tpu.core_type<tc>, window_params = [{transform_indices = @transform_0, window_bounds = array<i64: 1, 8, 32>}, {transform_indices = @transform_1, window_bounds = array<i64: 1, 8, 32>}, {transform_indices = @transform_2, window_bounds = array<i64: 1, 8, 32>}, {transform_indices = @transform_3, window_bounds = array<i64: 1, 8, 32>}]} {
    %c0 = arith.constant 0 : index
    %c0_0 = arith.constant 0 : index
    %c0_1 = arith.constant 0 : index
    %0 = vector.load %arg1[%c0, %c0_0, %c0_1] : memref<1x8x32xf32, #tpu.memory_space<vmem>>, vector<1x8x32xf32>
    %1 = vector.shape_cast %0 : vector<1x8x32xf32> to vector<8x32xf32>
    %c0_2 = arith.constant 0 : index
    %c0_3 = arith.constant 0 : index
    %c0_4 = arith.constant 0 : index
    %2 = vector.load %arg2[%c0_2, %c0_3, %c0_4] : memref<1x8x32xf32, #tpu.memory_space<vmem>>, vector<1x8x32xf32>
    %3 = vector.shape_cast %2 : vector<1x8x32xf32> to vector<8x32xf32>
    %c0_5 = arith.constant 0 : index
    %c0_6 = arith.constant 0 : index
    %c0_7 = arith.constant 0 : index
    %4 = vector.load %arg3[%c0_5, %c0_6, %c0_7] : memref<1x8x32xf32, #tpu.memory_space<vmem>>, vector<1x8x32xf32>
    %5 = vector.shape_cast %4 : vector<1x8x32xf32> to vector<8x32xf32>
    %6 = vector.extract_strided_slice %1 {offsets = [0, 0], sizes = [8, 8], strides = [1, 1]} : vector<8x32xf32> to vector<8x8xf32>
    %7 = vector.extract_strided_slice %3 {offsets = [0, 0], sizes = [8, 8], strides = [1, 1]} : vector<8x32xf32> to vector<8x8xf32>
    %8 = vector.extract_strided_slice %5 {offsets = [0, 0], sizes = [8, 8], strides = [1, 1]} : vector<8x32xf32> to vector<8x8xf32>
    %9 = tpu.transpose %7, [1, 0] : vector<8x8xf32> -> vector<8x8xf32>
    %cst = arith.constant dense<0.000000e+00> : vector<8x8xf32>
    %10 = tpu.matmul %6, %9, %cst {dimension_numbers = #tpu.dot_dimension_numbers<[1], [0], [0], [1], [0, 0, 1, 1], [], []>} : vector<8x8xf32>, vector<8x8xf32>, vector<8x8xf32> -> vector<8x8xf32>
    %cst_8 = arith.constant 0.353553385 : f32
    %11 = vector.broadcast %cst_8 : f32 to vector<8x8xf32>
    %12 = arith.mulf %10, %11 : vector<8x8xf32>
    %cst_9 = arith.constant dense<0xFF800000> : vector<8xf32>
    %13 = vector.multi_reduction <maximumf>, %12, %cst_9 [1] : vector<8x8xf32> to vector<8xf32>
    %14 = vector.shape_cast %13 : vector<8xf32> to vector<8x1xf32>
    %15 = vector.broadcast %14 : vector<8x1xf32> to vector<8x8xf32>
    %16 = arith.subf %12, %15 : vector<8x8xf32>
    %17 = math.exp %16 : vector<8x8xf32>
    %cst_10 = arith.constant dense<0.000000e+00> : vector<8xf32>
    %18 = vector.multi_reduction <add>, %17, %cst_10 [1] : vector<8x8xf32> to vector<8xf32>
    %19 = vector.shape_cast %18 : vector<8xf32> to vector<8x1xf32>
    %20 = tpu.reciprocal %19 {approx = true} : vector<8x1xf32> -> vector<8x1xf32>
    %21 = vector.broadcast %20 : vector<8x1xf32> to vector<8x8xf32>
    %22 = arith.mulf %17, %21 : vector<8x8xf32>
    %cst_11 = arith.constant dense<0.000000e+00> : vector<8x8xf32>
    %23 = tpu.matmul %22, %8, %cst_11 {dimension_numbers = #tpu.dot_dimension_numbers<[1], [0], [0], [1], [0, 0, 1, 1], [], []>} : vector<8x8xf32>, vector<8x8xf32>, vector<8x8xf32> -> vector<8x8xf32>
    %c0_12 = arith.constant 0 : index
    %c0_13 = arith.constant 0 : index
    %c0_14 = arith.constant 0 : index
    %24 = vector.load %arg4[%c0_12, %c0_13, %c0_14] : memref<1x8x32xf32, #tpu.memory_space<vmem>>, vector<1x8x8xf32>
    %25 = vector.shape_cast %24 : vector<1x8x8xf32> to vector<8x8xf32>
    %26 = vector.shape_cast %23 : vector<8x8xf32> to vector<1x8x8xf32>
    tpu.vector_store %arg4[%c0_12, %c0_13, %c0_14], %26 {strides = array<i32>} : memref<1x8x32xf32, #tpu.memory_space<vmem>>, vector<1x8x8xf32>,
    %27 = vector.extract_strided_slice %1 {offsets = [0, 8], sizes = [8, 8], strides = [1, 1]} : vector<8x32xf32> to vector<8x8xf32>
    %28 = vector.extract_strided_slice %3 {offsets = [0, 8], sizes = [8, 8], strides = [1, 1]} : vector<8x32xf32> to vector<8x8xf32>
    %29 = vector.extract_strided_slice %5 {offsets = [0, 8], sizes = [8, 8], strides = [1, 1]} : vector<8x32xf32> to vector<8x8xf32>
    %30 = tpu.transpose %28, [1, 0] : vector<8x8xf32> -> vector<8x8xf32>
    %cst_15 = arith.constant dense<0.000000e+00> : vector<8x8xf32>
    %31 = tpu.matmul %27, %30, %cst_15 {dimension_numbers = #tpu.dot_dimension_numbers<[1], [0], [0], [1], [0, 0, 1, 1], [], []>} : vector<8x8xf32>, vector<8x8xf32>, vector<8x8xf32> -> vector<8x8xf32>
    %cst_16 = arith.constant 0.353553385 : f32
    %32 = vector.broadcast %cst_16 : f32 to vector<8x8xf32>
    %33 = arith.mulf %31, %32 : vector<8x8xf32>
    %cst_17 = arith.constant dense<0xFF800000> : vector<8xf32>
    %34 = vector.multi_reduction <maximumf>, %33, %cst_17 [1] : vector<8x8xf32> to vector<8xf32>
    %35 = vector.shape_cast %34 : vector<8xf32> to vector<8x1xf32>
    %36 = vector.broadcast %35 : vector<8x1xf32> to vector<8x8xf32>
    %37 = arith.subf %33, %36 : vector<8x8xf32>
    %38 = math.exp %37 : vector<8x8xf32>
    %cst_18 = arith.constant dense<0.000000e+00> : vector<8xf32>
    %39 = vector.multi_reduction <add>, %38, %cst_18 [1] : vector<8x8xf32> to vector<8xf32>
    %40 = vector.shape_cast %39 : vector<8xf32> to vector<8x1xf32>
    %41 = tpu.reciprocal %40 {approx = true} : vector<8x1xf32> -> vector<8x1xf32>
    %42 = vector.broadcast %41 : vector<8x1xf32> to vector<8x8xf32>
    %43 = arith.mulf %38, %42 : vector<8x8xf32>
    %cst_19 = arith.constant dense<0.000000e+00> : vector<8x8xf32>
    %44 = tpu.matmul %43, %29, %cst_19 {dimension_numbers = #tpu.dot_dimension_numbers<[1], [0], [0], [1], [0, 0, 1, 1], [], []>} : vector<8x8xf32>, vector<8x8xf32>, vector<8x8xf32> -> vector<8x8xf32>
    %c0_20 = arith.constant 0 : index
    %c0_21 = arith.constant 0 : index
    %c8 = arith.constant 8 : index
    %45 = vector.load %arg4[%c0_20, %c0_21, %c8] : memref<1x8x32xf32, #tpu.memory_space<vmem>>, vector<1x8x8xf32>
    %46 = vector.shape_cast %45 : vector<1x8x8xf32> to vector<8x8xf32>
    %47 = vector.shape_cast %44 : vector<8x8xf32> to vector<1x8x8xf32>
    tpu.vector_store %arg4[%c0_20, %c0_21, %c8], %47 {strides = array<i32>} : memref<1x8x32xf32, #tpu.memory_space<vmem>>, vector<1x8x8xf32>,
    %48 = vector.extract_strided_slice %1 {offsets = [0, 16], sizes = [8, 8], strides = [1, 1]} : vector<8x32xf32> to vector<8x8xf32>
    %49 = vector.extract_strided_slice %3 {offsets = [0, 16], sizes = [8, 8], strides = [1, 1]} : vector<8x32xf32> to vector<8x8xf32>
    %50 = vector.extract_strided_slice %5 {offsets = [0, 16], sizes = [8, 8], strides = [1, 1]} : vector<8x32xf32> to vector<8x8xf32>
    %51 = tpu.transpose %49, [1, 0] : vector<8x8xf32> -> vector<8x8xf32>
    %cst_22 = arith.constant dense<0.000000e+00> : vector<8x8xf32>
    %52 = tpu.matmul %48, %51, %cst_22 {dimension_numbers = #tpu.dot_dimension_numbers<[1], [0], [0], [1], [0, 0, 1, 1], [], []>} : vector<8x8xf32>, vector<8x8xf32>, vector<8x8xf32> -> vector<8x8xf32>
    %cst_23 = arith.constant 0.353553385 : f32
    %53 = vector.broadcast %cst_23 : f32 to vector<8x8xf32>
    %54 = arith.mulf %52, %53 : vector<8x8xf32>
    %cst_24 = arith.constant dense<0xFF800000> : vector<8xf32>
    %55 = vector.multi_reduction <maximumf>, %54, %cst_24 [1] : vector<8x8xf32> to vector<8xf32>
    %56 = vector.shape_cast %55 : vector<8xf32> to vector<8x1xf32>
    %57 = vector.broadcast %56 : vector<8x1xf32> to vector<8x8xf32>
    %58 = arith.subf %54, %57 : vector<8x8xf32>
    %59 = math.exp %58 : vector<8x8xf32>
    %cst_25 = arith.constant dense<0.000000e+00> : vector<8xf32>
    %60 = vector.multi_reduction <add>, %59, %cst_25 [1] : vector<8x8xf32> to vector<8xf32>
    %61 = vector.shape_cast %60 : vector<8xf32> to vector<8x1xf32>
    %62 = tpu.reciprocal %61 {approx = true} : vector<8x1xf32> -> vector<8x1xf32>
    %63 = vector.broadcast %62 : vector<8x1xf32> to vector<8x8xf32>
    %64 = arith.mulf %59, %63 : vector<8x8xf32>
    %cst_26 = arith.constant dense<0.000000e+00> : vector<8x8xf32>
    %65 = tpu.matmul %64, %50, %cst_26 {dimension_numbers = #tpu.dot_dimension_numbers<[1], [0], [0], [1], [0, 0, 1, 1], [], []>} : vector<8x8xf32>, vector<8x8xf32>, vector<8x8xf32> -> vector<8x8xf32>
    %c0_27 = arith.constant 0 : index
    %c0_28 = arith.constant 0 : index
    %c16 = arith.constant 16 : index
    %66 = vector.load %arg4[%c0_27, %c0_28, %c16] : memref<1x8x32xf32, #tpu.memory_space<vmem>>, vector<1x8x8xf32>
    %67 = vector.shape_cast %66 : vector<1x8x8xf32> to vector<8x8xf32>
    %68 = vector.shape_cast %65 : vector<8x8xf32> to vector<1x8x8xf32>
    tpu.vector_store %arg4[%c0_27, %c0_28, %c16], %68 {strides = array<i32>} : memref<1x8x32xf32, #tpu.memory_space<vmem>>, vector<1x8x8xf32>,
    %69 = vector.extract_strided_slice %1 {offsets = [0, 24], sizes = [8, 8], strides = [1, 1]} : vector<8x32xf32> to vector<8x8xf32>
    %70 = vector.extract_strided_slice %3 {offsets = [0, 24], sizes = [8, 8], strides = [1, 1]} : vector<8x32xf32> to vector<8x8xf32>
    %71 = vector.extract_strided_slice %5 {offsets = [0, 24], sizes = [8, 8], strides = [1, 1]} : vector<8x32xf32> to vector<8x8xf32>
    %72 = tpu.transpose %70, [1, 0] : vector<8x8xf32> -> vector<8x8xf32>
    %cst_29 = arith.constant dense<0.000000e+00> : vector<8x8xf32>
    %73 = tpu.matmul %69, %72, %cst_29 {dimension_numbers = #tpu.dot_dimension_numbers<[1], [0], [0], [1], [0, 0, 1, 1], [], []>} : vector<8x8xf32>, vector<8x8xf32>, vector<8x8xf32> -> vector<8x8xf32>
    %cst_30 = arith.constant 0.353553385 : f32
    %74 = vector.broadcast %cst_30 : f32 to vector<8x8xf32>
    %75 = arith.mulf %73, %74 : vector<8x8xf32>
    %cst_31 = arith.constant dense<0xFF800000> : vector<8xf32>
    %76 = vector.multi_reduction <maximumf>, %75, %cst_31 [1] : vector<8x8xf32> to vector<8xf32>
    %77 = vector.shape_cast %76 : vector<8xf32> to vector<8x1xf32>
    %78 = vector.broadcast %77 : vector<8x1xf32> to vector<8x8xf32>
    %79 = arith.subf %75, %78 : vector<8x8xf32>
    %80 = math.exp %79 : vector<8x8xf32>
    %cst_32 = arith.constant dense<0.000000e+00> : vector<8xf32>
    %81 = vector.multi_reduction <add>, %80, %cst_32 [1] : vector<8x8xf32> to vector<8xf32>
    %82 = vector.shape_cast %81 : vector<8xf32> to vector<8x1xf32>
    %83 = tpu.reciprocal %82 {approx = true} : vector<8x1xf32> -> vector<8x1xf32>
    %84 = vector.broadcast %83 : vector<8x1xf32> to vector<8x8xf32>
    %85 = arith.mulf %80, %84 : vector<8x8xf32>
    %cst_33 = arith.constant dense<0.000000e+00> : vector<8x8xf32>
    %86 = tpu.matmul %85, %71, %cst_33 {dimension_numbers = #tpu.dot_dimension_numbers<[1], [0], [0], [1], [0, 0, 1, 1], [], []>} : vector<8x8xf32>, vector<8x8xf32>, vector<8x8xf32> -> vector<8x8xf32>
    %c0_34 = arith.constant 0 : index
    %c0_35 = arith.constant 0 : index
    %c24 = arith.constant 24 : index
    %87 = vector.load %arg4[%c0_34, %c0_35, %c24] : memref<1x8x32xf32, #tpu.memory_space<vmem>>, vector<1x8x8xf32>
    %88 = vector.shape_cast %87 : vector<1x8x8xf32> to vector<8x8xf32>
    %89 = vector.shape_cast %86 : vector<8x8xf32> to vector<1x8x8xf32>
    tpu.vector_store %arg4[%c0_34, %c0_35, %c24], %89 {strides = array<i32>} : memref<1x8x32xf32, #tpu.memory_space<vmem>>, vector<1x8x8xf32>,
    return
  }
  func.func @transform_0(%arg0: i32) -> (i32, i32, i32) {
    %c0_i32 = arith.constant 0 : i32
    %c0_i32_0 = arith.constant 0 : i32
    %c0_i32_1 = arith.constant 0 : i32
    return %arg0, %c0_i32, %c0_i32_0 : i32, i32, i32
  }
  func.func @transform_1(%arg0: i32) -> (i32, i32, i32) {
    %c0_i32 = arith.constant 0 : i32
    %c0_i32_0 = arith.constant 0 : i32
    %c0_i32_1 = arith.constant 0 : i32
    return %arg0, %c0_i32, %c0_i32_0 : i32, i32, i32
  }
  func.func @transform_2(%arg0: i32) -> (i32, i32, i32) {
    %c0_i32 = arith.constant 0 : i32
    %c0_i32_0 = arith.constant 0 : i32
    %c0_i32_1 = arith.constant 0 : i32
    return %arg0, %c0_i32, %c0_i32_0 : i32, i32, i32
  }
  func.func @transform_3(%arg0: i32) -> (i32, i32, i32) {
    %c0_i32 = arith.constant 0 : i32
    %c0_i32_0 = arith.constant 0 : i32
    %c0_i32_1 = arith.constant 0 : i32
    return %arg0, %c0_i32, %c0_i32_0 : i32, i32, i32
  }
}

</mosaic_0001>

<llo_original>
// kernel: bert_dim_pos_extrapol_layer.3
$region0: #{bert_dim_pos_extrapol_layer.3}
  #allocation0 [shape = 'u32[]', space=smem, size = 0x4, offset = 0x4, fixed_abs, tag = 'smem constant byte address 0x4 - core index']
  #allocation1 [shape = 'u32[144,128]{1,0:T(1,128)}', space=vmem, size = 0x12000, scoped, tag = 'internal scratch']
  %s0 = inlined_call_operand.hbm [shape: f32[16,32], index: 0, kind: input, shape index: {}]
  %s1 = inlined_call_operand.vmem [shape: f32[32,96], index: 1, kind: input, shape index: {}]
  %s2 = inlined_call_operand.vmem [shape: f32[1,96], index: 2, kind: input, shape index: {}]
  %s3 = inlined_call_operand.vmem [shape: f32[16,32], index: 3, kind: output, shape index: {0}]
  %s4 = inlined_call_operand.vmem [shape: f32[16,32], index: 4, kind: output, shape index: {1}]
  %s5 = inlined_call_operand.vmem [shape: f32[16,32], index: 5, kind: output, shape index: {2}]
  %6 = xla_tuple %s3, %s4, %s5
  %s7 = sld [smem:[#allocation0]]
  $region65: #{bert_dim_pos_extrapol_layer.3} parent=0
    _
  %s9 = ssub.s32 1, %s7
  %s10 = scalar_select 0, %s9, %s7
  $region1: #{bert_dim_pos_extrapol_layer.3} parent=0
    #allocation2 [shape = 'u8[8192]{0}', space=vmem, size = 0x2000, scoped, tag = 'input window, operand 0']
    #allocation3 [shape = 's32[2]{0}', space=sflag, size = 0x8, scoped, tag = 'scoped memory for bert_dim_pos_extrapol_layer.3']
    %11 = vsyncpa [#allocation3], 0
    %s12 = scalar_lea.sflag [#allocation3], 1
    %13 = vsyncpa %s12, 0
    loop: start=0, step=1, limit=4
    $region2: #{bert_dim_pos_extrapol_layer.3} parent=1 // loop_pre_header
      _
    $region3: #{bert_dim_pos_extrapol_layer.3} parent=1 // loop_header
      %s15 = sphi 0, %s19
      %p16 = scmp.ge.s32.totalorder %s15, 4
      %s25 = sphi 0, %s27
      %s28 = sphi 0, %s25
      %s29 = sphi 0, %s28
      %s45 = sphi 0, %s29
      %s49 = sphi 0, %s49
      %s51 = sphi 0, %s49
      %s52 = sphi 0, %s51
      %s66 = sphi 0, %s52
      %s70 = sphi 0, %s70
      %s72 = sphi 0, %s70
      %s73 = sphi 0, %s72
      %s87 = sphi 0, %s73
      %s93 = sphi 0, %s95
      %s96 = sphi 0, %s93
      %s97 = sphi 0, %s96
      %s113 = sphi 0, %s97
      %s119 = sphi 0, %s121
      %s122 = sphi 0, %s119
      %s123 = sphi 0, %s122
      %s139 = sphi 0, %s123
      %s145 = sphi 0, %s147
      %s148 = sphi 0, %s145
      %s149 = sphi 0, %s148
      %s165 = sphi 0, %s149
    $region4: #{bert_dim_pos_extrapol_layer.3} parent=1 // loop_header_branch
      %18 = sbr.rel (%p16) target = $region8
    $region5: #{bert_dim_pos_extrapol_layer.3} parent=1 // loop_body
      %s20 = ssub.s32 %s15, 1
      %s21 = ssub.s32 %s15, 2
      %s22 = sadd.s32 %s15, 1
      %s23 = ssub.s32 %s15, %s22
      %p24 = scmp.eq.s32.totalorder %s23, 0
      %s26 = sadd.s32 %s25, 1
      %s27 = scalar_select %p24, %s25, %s26
      %p30 = pneg %p24
      %p31 = scmp.eq.s32.totalorder %s15, 1
      %p32 = por %p30, %p31
      %p33 = scmp.ne.s32.totalorder %s25, %s28
      %p34 = scmp.eq.s32.totalorder %s15, 0
      %p35 = por %p33, %p34
      %p36 = scmp.ne.s32.totalorder %s25, %s28
      %p37 = scmp.eq.s32.totalorder %s20, 1
      %p38 = por %p36, %p37
      %p39 = scmp.ne.s32.totalorder %s28, %s29
      %p40 = scmp.eq.s32.totalorder %s20, 0
      %p41 = por %p39, %p40
      %p42 = scmp.ne.s32.totalorder %s28, %s29
      %p43 = scmp.eq.s32.totalorder %s21, 1
      %p44 = por %p42, %p43
      %p46 = scmp.ne.s32.totalorder %s29, %s45
      %p47 = scmp.eq.s32.totalorder %s21, 0
      %p48 = por %p46, %p47
      %s50 = sadd.s32 %s49, 1
      %p53 = scmp.eq.s32.totalorder %s15, 1
      %p54 = scmp.ne.s32.totalorder %s49, %s51
      %p55 = scmp.eq.s32.totalorder %s15, 0
      %p56 = por %p54, %p55
      %p57 = scmp.ne.s32.totalorder %s49, %s51
      %p58 = scmp.eq.s32.totalorder %s20, 1
      %p59 = por %p57, %p58
      %p60 = scmp.ne.s32.totalorder %s51, %s52
      %p61 = scmp.eq.s32.totalorder %s20, 0
      %p62 = por %p60, %p61
      %p63 = scmp.ne.s32.totalorder %s51, %s52
      %p64 = scmp.eq.s32.totalorder %s21, 1
      %p65 = por %p63, %p64
      %p67 = scmp.ne.s32.totalorder %s52, %s66
      %p68 = scmp.eq.s32.totalorder %s21, 0
      %p69 = por %p67, %p68
      %s71 = sadd.s32 %s70, 1
      %p74 = scmp.eq.s32.totalorder %s15, 1
      %p75 = scmp.ne.s32.totalorder %s70, %s72
      %p76 = scmp.eq.s32.totalorder %s15, 0
      %p77 = por %p75, %p76
      %p78 = scmp.ne.s32.totalorder %s70, %s72
      %p79 = scmp.eq.s32.totalorder %s20, 1
      %p80 = por %p78, %p79
      %p81 = scmp.ne.s32.totalorder %s72, %s73
      %p82 = scmp.eq.s32.totalorder %s20, 0
      %p83 = por %p81, %p82
      %p84 = scmp.ne.s32.totalorder %s72, %s73
      %p85 = scmp.eq.s32.totalorder %s21, 1
      %p86 = por %p84, %p85
      %p88 = scmp.ne.s32.totalorder %s73, %s87
      %p89 = scmp.eq.s32.totalorder %s21, 0
      %p90 = por %p88, %p89
      %s91 = ssub.s32 %s15, %s22
      %p92 = scmp.eq.s32.totalorder %s91, 0
      %s94 = sadd.s32 %s93, 1
      %s95 = scalar_select %p92, %s93, %s94
      %p98 = pneg %p92
      %p99 = scmp.eq.s32.totalorder %s15, 1
      %p100 = por %p98, %p99
      %p101 = scmp.ne.s32.totalorder %s93, %s96
      %p102 = scmp.eq.s32.totalorder %s15, 0
      %p103 = por %p101, %p102
      %p104 = scmp.ne.s32.totalorder %s93, %s96
      %p105 = scmp.eq.s32.totalorder %s20, 1
      %p106 = por %p104, %p105
      %p107 = scmp.ne.s32.totalorder %s96, %s97
      %p108 = scmp.eq.s32.totalorder %s20, 0
      %p109 = por %p107, %p108
      %p110 = scmp.ne.s32.totalorder %s96, %s97
      %p111 = scmp.eq.s32.totalorder %s21, 1
      %p112 = por %p110, %p111
      %p114 = scmp.ne.s32.totalorder %s97, %s113
      %p115 = scmp.eq.s32.totalorder %s21, 0
      %p116 = por %p114, %p115
      %s117 = ssub.s32 %s15, %s22
      %p118 = scmp.eq.s32.totalorder %s117, 0
      %s120 = sadd.s32 %s119, 1
      %s121 = scalar_select %p118, %s119, %s120
      %p124 = pneg %p118
      %p125 = scmp.eq.s32.totalorder %s15, 1
      %p126 = por %p124, %p125
      %p127 = scmp.ne.s32.totalorder %s119, %s122
      %p128 = scmp.eq.s32.totalorder %s15, 0
      %p129 = por %p127, %p128
      %p130 = scmp.ne.s32.totalorder %s119, %s122
      %p131 = scmp.eq.s32.totalorder %s20, 1
      %p132 = por %p130, %p131
      %p133 = scmp.ne.s32.totalorder %s122, %s123
      %p134 = scmp.eq.s32.totalorder %s20, 0
      %p135 = por %p133, %p134
      %p136 = scmp.ne.s32.totalorder %s122, %s123
      %p137 = scmp.eq.s32.totalorder %s21, 1
      %p138 = por %p136, %p137
      %p140 = scmp.ne.s32.totalorder %s123, %s139
      %p141 = scmp.eq.s32.totalorder %s21, 0
      %p142 = por %p140, %p141
      %s143 = ssub.s32 %s15, %s22
      %p144 = scmp.eq.s32.totalorder %s143, 0
      %s146 = sadd.s32 %s145, 1
      %s147 = scalar_select %p144, %s145, %s146
      %p150 = pneg %p144
      %p151 = scmp.eq.s32.totalorder %s15, 1
      %p152 = por %p150, %p151
      %p153 = scmp.ne.s32.totalorder %s145, %s148
      %p154 = scmp.eq.s32.totalorder %s15, 0
      %p155 = por %p153, %p154
      %p156 = scmp.ne.s32.totalorder %s145, %s148
      %p157 = scmp.eq.s32.totalorder %s20, 1
      %p158 = por %p156, %p157
      %p159 = scmp.ne.s32.totalorder %s148, %s149
      %p160 = scmp.eq.s32.totalorder %s20, 0
      %p161 = por %p159, %p160
      %p162 = scmp.ne.s32.totalorder %s148, %s149
      %p163 = scmp.eq.s32.totalorder %s21, 1
      %p164 = por %p162, %p163
      %p166 = scmp.ne.s32.totalorder %s149, %s165
      %p167 = scmp.eq.s32.totalorder %s21, 0
      %p168 = por %p166, %p167
      %p169 = scmp.le.s32.totalorder 1, %s15
      %p170 = scmp.lt.s32.totalorder %s15, 3
      %p171 = pnand %p169, %p170
      %p172 = pneg %p171
      // Predicated region
      $region9: #{bert_dim_pos_extrapol_layer.3} parent=5 // pred_check
        _
      $region10: #{bert_dim_pos_extrapol_layer.3} parent=5 // pred_check_branch
        %174 = sbr.rel (%p171) target = $region12
      $region11: #{bert_dim_pos_extrapol_layer.3} parent=5 // pred_region
        %s175 = ssub.s32 %s15, 1
        // Predicated region
        $region13: #{bert_dim_pos_extrapol_layer.3} parent=11 // pred_check
          %p176 = pneg %p62
        $region14: #{bert_dim_pos_extrapol_layer.3} parent=11 // pred_check_branch
          %178 = sbr.rel (%p176) target = $region16
        $region15: #{bert_dim_pos_extrapol_layer.3} parent=11 // pred_region
          _
        $region16: #{bert_dim_pos_extrapol_layer.3} parent=11 // pred_fallthru
          _
        // Predicated region
        $region17: #{bert_dim_pos_extrapol_layer.3} parent=11 // pred_check
          %p179 = pneg %p83
        $region18: #{bert_dim_pos_extrapol_layer.3} parent=11 // pred_check_branch
          %181 = sbr.rel (%p179) target = $region20
        $region19: #{bert_dim_pos_extrapol_layer.3} parent=11 // pred_region
          _
        $region20: #{bert_dim_pos_extrapol_layer.3} parent=11 // pred_fallthru
          _
      $region12: #{bert_dim_pos_extrapol_layer.3} parent=5 // pred_fallthru
        _
      %p182 = scmp.lt.s32.totalorder %s15, 2
      // Predicated region
      $region21: #{bert_dim_pos_extrapol_layer.3} parent=5 // pred_check
        %p183 = pneg %p182
      $region22: #{bert_dim_pos_extrapol_layer.3} parent=5 // pred_check_branch
        %185 = sbr.rel (%p183) target = $region24
      $region23: #{bert_dim_pos_extrapol_layer.3} parent=5 // pred_region
        // Predicated region
        $region25: #{bert_dim_pos_extrapol_layer.3} parent=23 // pred_check
          %p186 = pneg %p35
        $region26: #{bert_dim_pos_extrapol_layer.3} parent=23 // pred_check_branch
          %188 = sbr.rel (%p186) target = $region28
        $region27: #{bert_dim_pos_extrapol_layer.3} parent=23 // pred_region
          %s189 = sand.u32 %s25, 1
          %s190 = scalar_lea.sflag [#allocation3], %s189
          %s191 = sand.u32 %s25, 1
          %s192 = smul.addr %s191, 8
          %s193 = scalar_lea.vmem [#allocation2], %s192
          %s195 = ssub.s32 128, 128
          %196 = vsyncadd %s190, %s195
          %s197 = smul.addr %s15, 128
          %s198 = scalar_lea.hbm %s0, %s197
          %s200 = sshll.u32 %s193, 4
          %s201 = int_to_ptr.vmem [resolvable:$true] %s200
          %203 = dma.hbm_to_vmem [thread:$0]  %s198, 128, %s201, %s190
        $region28: #{bert_dim_pos_extrapol_layer.3} parent=23 // pred_fallthru
          _
      $region24: #{bert_dim_pos_extrapol_layer.3} parent=5 // pred_fallthru
        _
      %p204 = scmp.le.s32.totalorder 1, %s15
      %p205 = scmp.lt.s32.totalorder %s15, 3
      %p206 = pnand %p204, %p205
      %p207 = pneg %p206
      // Predicated region
      $region29: #{bert_dim_pos_extrapol_layer.3} parent=5 // pred_check
        _
      $region30: #{bert_dim_pos_extrapol_layer.3} parent=5 // pred_check_branch
        %209 = sbr.rel (%p206) target = $region32
      $region31: #{bert_dim_pos_extrapol_layer.3} parent=5 // pred_region
        %s210 = ssub.s32 %s15, 1
        %s211 = sand.u32 %s28, 1
        %s212 = scalar_lea.sflag [#allocation3], %s211
        %s213 = sand.u32 %s28, 1
        %s214 = smul.addr %s213, 8
        %s215 = scalar_lea.vmem [#allocation2], %s214
        // Predicated region
        $region33: #{bert_dim_pos_extrapol_layer.3} parent=31 // pred_check
          %p216 = pneg %p41
        $region34: #{bert_dim_pos_extrapol_layer.3} parent=31 // pred_check_branch
          %218 = sbr.rel (%p216) target = $region36
        $region35: #{bert_dim_pos_extrapol_layer.3} parent=31 // pred_region
          %219 = dma.done %s212, 128
        $region36: #{bert_dim_pos_extrapol_layer.3} parent=31 // pred_fallthru
          _
        %s220 = sand.u32 %s28, 1
        %s221 = scalar_lea.sflag [#allocation3], %s220
        %s222 = sand.u32 %s28, 1
        %s223 = smul.addr %s222, 8
        %s224 = scalar_lea.vmem [#allocation2], %s223
        %p225 = pneg %p41
        %p226 = pneg %p38
        %p227 = pneg %p62
        %p228 = pneg %p59
        %p229 = pneg %p83
        %p230 = pneg %p80
        %p231 = pneg %p109
        %p232 = pneg %p106
        %p233 = scmp.lt.s32.totalorder %s20, 1
        %s234 = scalar_select %p233, %s20, 1
        %s235 = smul.addr %s234, 8
        %s236 = scalar_lea.vmem %s3, %s235
        %p237 = pneg %p135
        %p238 = pneg %p132
        %p239 = scmp.lt.s32.totalorder %s20, 1
        %s240 = scalar_select %p239, %s20, 1
        %s241 = smul.addr %s240, 8
        %s242 = scalar_lea.vmem %s4, %s241
        %p243 = pneg %p161
        %p244 = pneg %p158
        %p245 = scmp.lt.s32.totalorder %s20, 1
        %s246 = scalar_select %p245, %s20, 1
        %s247 = smul.addr %s246, 8
        %s248 = scalar_lea.vmem %s5, %s247
        %p249 = scmp.lt.s32.totalorder %s20, 1
        %s250 = scalar_select %p249, %s20, 1
        %s251 = smul.addr %s250, 8
        %s252 = scalar_lea.vmem %s3, %s251
        %p253 = scmp.lt.s32.totalorder %s20, 1
        %s254 = scalar_select %p253, %s20, 1
        %s255 = smul.addr %s254, 8
        %s256 = scalar_lea.vmem %s4, %s255
        %p257 = scmp.lt.s32.totalorder %s20, 1
        %s258 = scalar_select %p257, %s20, 1
        %s259 = smul.addr %s258, 8
        %s260 = scalar_lea.vmem %s5, %s259
        %v261 = vld [vmem:[%s215] sm:$0xff]
        %v262 = vld [vmem:[%s1] sm:$0xff]
        %v263 = vld [vmem:[%s1 + $0x8] sm:$0xff]
        %v264 = vld [vmem:[%s1 + $0x10] sm:$0xff]
        %v265 = vld [vmem:[%s1 + $0x18] sm:$0xff]
        %v266 = vld [vmem:[%s2] sm:$0x1]
        %v268 = vlaneseq
        %v269 = vshrl.u32 %v268, 7
        %v270 = vsub.s32 0, %v269
        %v271 = vrot.slane %v266, %v270
        %vm273 = vcmask 261120
        %v275 = vsel %vm273, %v261, 0
        %277 = vmatprep.subr.mxu0 0.0
        %278 = vmatpush1.msra.mxu0 %v262
        %279 = vmatprep.subr.mxu0 0.0
        %280 = vmatpush1.msra.mxu0 %v263
        %281 = vmatprep.subr.mxu0 0.0
        %282 = vmatpush1.msra.mxu0 %v264
        %283 = vmatprep.subr.mxu0 0.0
        %284 = vmatpush1.msra.mxu0 %v265
        %285 = vmatprep.subr.mxu0 0.0
        %286 = vmatpush1.msra.mxu0 0.0
        %287 = vmatprep.subr.mxu0 0.0
        %288 = vmatpush1.msra.mxu0 0.0
        %289 = vmatprep.subr.mxu0 0.0
        %290 = vmatpush1.msra.mxu0 0.0
        %291 = vmatprep.subr.mxu0 0.0
        %292 = vmatpush1.msra.mxu0 0.0
        %293 = vmatprep.subr.mxu0 0.0
        %294 = vmatpush1.msra.mxu0 0.0
        %295 = vmatprep.subr.mxu0 0.0
        %296 = vmatpush1.msra.mxu0 0.0
        %297 = vmatprep.subr.mxu0 0.0
        %298 = vmatpush1.msra.mxu0 0.0
        %299 = vmatprep.subr.mxu0 0.0
        %300 = vmatpush1.msra.mxu0 0.0
        %301 = vmatprep.subr.mxu0 0.0
        %302 = vmatpush1.msra.mxu0 0.0
        %303 = vmatprep.subr.mxu0 0.0
        %304 = vmatpush1.msra.mxu0 0.0
        %305 = vmatprep.subr.mxu0 0.0
        %306 = vmatpush1.msra.mxu0 0.0
        %307 = vmatprep.subr.mxu0 0.0
        %308 = vmatpush1.msra.mxu0 0.0
        %309 = vmatprep.subr.mxu0 0.0
        %310 = vmatpush1.msra.mxu0 0.0
        %311 = vmatprep.subr.mxu0 0.0
        %312 = vmatpush1.msra.mxu0 0.0
        %313 = vmatprep.subr.mxu0 0.0
        %314 = vmatpush1.msra.mxu0 0.0
        %315 = vmatprep.subr.mxu0 0.0
        %316 = vmatpush1.msra.mxu0 0.0
        %317 = vmatprep.subr.mxu0 0.0
        %318 = vmatpush1.msra.mxu0 0.0
        %319 = vmatprep.subr.mxu0 0.0
        %320 = vmatpush1.msra.mxu0 0.0
        %321 = vmatprep.subr.mxu0 0.0
        %322 = vmatpush1.msra.mxu0 0.0
        %323 = vmatprep.subr.mxu0 0.0
        %324 = vmatpush1.msra.mxu0 0.0
        %325 = vmatprep.subr.mxu0 0.0
        %326 = vmatpush1.msra.mxu0 0.0
        %327 = vmatprep.subr.mxu0 0.0
        %328 = vmatpush1.msra.mxu0 0.0
        %329 = vmatprep.subr.mxu0 0.0
        %330 = vmatpush1.msra.mxu0 0.0
        %331 = vmatprep.subr.mxu0 0.0
        %332 = vmatpush1.msra.mxu0 0.0
        %333 = vmatprep.subr.mxu0 0.0
        %334 = vmatpush1.msra.mxu0 0.0
        %335 = vmatprep.subr.mxu0 0.0
        %336 = vmatpush1.msra.mxu0 0.0
        %337 = vmatprep.subr.mxu0 0.0
        %338 = vmatpush1.msra.mxu0 0.0
        %339 = vmatprep.subr.mxu0 0.0
        %340 = vmatpush1.msra.mxu0 0.0
        %341 = vmatprep.mubr.f32.mxu0 0.0
        %342 = vmatmul.mubr.f32.gmra.mrb[0].mxu0 %v275
        %v343 = vpop.f32.mrb[0].mxu0
        %v344 = vadd.f32 %v271, %v343
        %v345 = vpop.f32.mrb[0].mxu0
        %346 = vdwg.mxu0
        %347 = vst.msk [vmem:[%s252] sm:$0xff] %vm273, %v344
        %349 = vrot.lane.b32.xlu0 %v344, 96
        %v350 = vpop.permute.xlu0 %349
        %352 = vst.msk [vmem:[%s256] sm:$0xff] %vm273, %v350
        %353 = vrot.lane.b32.xlu0 %v344, 64
        %v354 = vpop.permute.xlu0 %353
        %356 = vst.msk [vmem:[%s260] sm:$0xff] %vm273, %v354
        %p357 = scmp.lt.s32.totalorder %s20, 1
        %s358 = scalar_select %p357, %s20, 1
        %s359 = smul.addr %s358, 8
        %s360 = scalar_lea.vmem %s3, %s359
        %p361 = scmp.lt.s32.totalorder %s20, 1
        %s362 = scalar_select %p361, %s20, 1
        %s363 = smul.addr %s362, 8
        %s364 = scalar_lea.vmem %s4, %s363
        %p365 = scmp.lt.s32.totalorder %s20, 1
        %s366 = scalar_select %p365, %s20, 1
        %s367 = smul.addr %s366, 8
        %s368 = scalar_lea.vmem %s5, %s367
        // Predicated region
        $region37: #{bert_dim_pos_extrapol_layer.3} parent=31 // pred_check
          %p369 = pneg %p106
        $region38: #{bert_dim_pos_extrapol_layer.3} parent=31 // pred_check_branch
          %371 = sbr.rel (%p369) target = $region40
        $region39: #{bert_dim_pos_extrapol_layer.3} parent=31 // pred_region
          _
        $region40: #{bert_dim_pos_extrapol_layer.3} parent=31 // pred_fallthru
          _
        // Predicated region
        $region41: #{bert_dim_pos_extrapol_layer.3} parent=31 // pred_check
          %p372 = pneg %p132
        $region42: #{bert_dim_pos_extrapol_layer.3} parent=31 // pred_check_branch
          %374 = sbr.rel (%p372) target = $region44
        $region43: #{bert_dim_pos_extrapol_layer.3} parent=31 // pred_region
          _
        $region44: #{bert_dim_pos_extrapol_layer.3} parent=31 // pred_fallthru
          _
        // Predicated region
        $region45: #{bert_dim_pos_extrapol_layer.3} parent=31 // pred_check
          %p375 = pneg %p158
        $region46: #{bert_dim_pos_extrapol_layer.3} parent=31 // pred_check_branch
          %377 = sbr.rel (%p375) target = $region48
        $region47: #{bert_dim_pos_extrapol_layer.3} parent=31 // pred_region
          _
        $region48: #{bert_dim_pos_extrapol_layer.3} parent=31 // pred_fallthru
          _
      $region32: #{bert_dim_pos_extrapol_layer.3} parent=5 // pred_fallthru
        _
      %p378 = scmp.le.s32.totalorder 2, %s15
      // Predicated region
      $region49: #{bert_dim_pos_extrapol_layer.3} parent=5 // pred_check
        %p379 = pneg %p378
      $region50: #{bert_dim_pos_extrapol_layer.3} parent=5 // pred_check_branch
        %381 = sbr.rel (%p379) target = $region52
      $region51: #{bert_dim_pos_extrapol_layer.3} parent=5 // pred_region
        %s382 = ssub.s32 %s15, 2
        // Predicated region
        $region53: #{bert_dim_pos_extrapol_layer.3} parent=51 // pred_check
          %p383 = pneg %p112
        $region54: #{bert_dim_pos_extrapol_layer.3} parent=51 // pred_check_branch
          %385 = sbr.rel (%p383) target = $region56
        $region55: #{bert_dim_pos_extrapol_layer.3} parent=51 // pred_region
          %p386 = scmp.lt.s32.totalorder %s21, 1
          %s387 = scalar_select %p386, %s21, 1
          %s388 = smul.addr %s387, 8
          %s389 = scalar_lea.vmem %s3, %s388
        $region56: #{bert_dim_pos_extrapol_layer.3} parent=51 // pred_fallthru
          _
        // Predicated region
        $region57: #{bert_dim_pos_extrapol_layer.3} parent=51 // pred_check
          %p390 = pneg %p138
        $region58: #{bert_dim_pos_extrapol_layer.3} parent=51 // pred_check_branch
          %392 = sbr.rel (%p390) target = $region60
        $region59: #{bert_dim_pos_extrapol_layer.3} parent=51 // pred_region
          %p393 = scmp.lt.s32.totalorder %s21, 1
          %s394 = scalar_select %p393, %s21, 1
          %s395 = smul.addr %s394, 8
          %s396 = scalar_lea.vmem %s4, %s395
        $region60: #{bert_dim_pos_extrapol_layer.3} parent=51 // pred_fallthru
          _
        // Predicated region
        $region61: #{bert_dim_pos_extrapol_layer.3} parent=51 // pred_check
          %p397 = pneg %p164
        $region62: #{bert_dim_pos_extrapol_layer.3} parent=51 // pred_check_branch
          %399 = sbr.rel (%p397) target = $region64
        $region63: #{bert_dim_pos_extrapol_layer.3} parent=51 // pred_region
          %p400 = scmp.lt.s32.totalorder %s21, 1
          %s401 = scalar_select %p400, %s21, 1
          %s402 = smul.addr %s401, 8
          %s403 = scalar_lea.vmem %s5, %s402
        $region64: #{bert_dim_pos_extrapol_layer.3} parent=51 // pred_fallthru
          _
      $region52: #{bert_dim_pos_extrapol_layer.3} parent=5 // pred_fallthru
        _
    $region6: #{bert_dim_pos_extrapol_layer.3} parent=1 // loop_footer
      %s19 = sadd.s32 1, %s15
    $region7: #{bert_dim_pos_extrapol_layer.3} parent=1 // loop_footer_branch
      %14 = sbr.rel target = $region3
    $region8: #{bert_dim_pos_extrapol_layer.3} parent=1 // loop_exit
      _
    %404 = vsyncpa [#allocation3], 1
    %s405 = scalar_lea.sflag [#allocation3], 1
    %406 = vsyncpa %s405, 1

// kernel: bert_dim_pos_extrapol_layer.5
$region0: #{bert_dim_pos_extrapol_layer.5}
  #allocation0 [shape = 'u32[]', space=smem, size = 0x4, offset = 0x4, fixed_abs, tag = 'smem constant byte address 0x4 - core index']
  #allocation1 [shape = 'u32[144,128]{1,0:T(1,128)}', space=vmem, size = 0x12000, scoped, tag = 'internal scratch']
  %s0 = inlined_call_operand.vmem [shape: f32[16,32], index: 0, kind: input, shape index: {}]
  %s1 = inlined_call_operand.vmem [shape: f32[16,32], index: 1, kind: input, shape index: {}]
  %s2 = inlined_call_operand.vmem [shape: f32[32,32], index: 2, kind: input, shape index: {}]
  %s3 = inlined_call_operand.vmem [shape: f32[1,32], index: 3, kind: input, shape index: {}]
  %s4 = inlined_call_operand.vmem [shape: f32[1,32], index: 4, kind: input, shape index: {}]
  %s5 = inlined_call_operand.vmem [shape: f32[1,32], index: 5, kind: input, shape index: {}]
  %s6 = inlined_call_operand.vmem [shape: f32[32,128], index: 6, kind: input, shape index: {}]
  %s7 = inlined_call_operand.vmem [shape: f32[1,128], index: 7, kind: input, shape index: {}]
  %s8 = inlined_call_operand.vmem [shape: f32[128,32], index: 8, kind: input, shape index: {}]
  %s9 = inlined_call_operand.vmem [shape: f32[1,32], index: 9, kind: input, shape index: {}]
  %s10 = inlined_call_operand.vmem [shape: f32[1,32], index: 10, kind: input, shape index: {}]
  %s11 = inlined_call_operand.vmem [shape: f32[1,32], index: 11, kind: input, shape index: {}]
  %s12 = inlined_call_operand.hbm [shape: f32[16,32], index: 12, kind: output, shape index: {}]
  %s13 = sld [smem:[#allocation0]]
  $region81: #{bert_dim_pos_extrapol_layer.5} parent=0
    _
  %s15 = ssub.s32 1, %s13
  %s16 = scalar_select 0, %s15, %s13
  $region1: #{bert_dim_pos_extrapol_layer.5} parent=0
    #allocation2 [shape = 'u8[8192]{0}', space=vmem, size = 0x2000, scoped, tag = 'output window, operand 0']
    #allocation3 [shape = 's32[2]{0}', space=sflag, size = 0x8, scoped, tag = 'scoped memory for bert_dim_pos_extrapol_layer.5']
    %17 = vsyncpa [#allocation3], 0
    %s18 = scalar_lea.sflag [#allocation3], 1
    %19 = vsyncpa %s18, 0
    loop: start=0, step=1, limit=4
    $region2: #{bert_dim_pos_extrapol_layer.5} parent=1 // loop_pre_header
      _
    $region3: #{bert_dim_pos_extrapol_layer.5} parent=1 // loop_header
      %s21 = sphi 0, %s25
      %p22 = scmp.ge.s32.totalorder %s21, 4
      %s31 = sphi 0, %s33
      %s34 = sphi 0, %s31
      %s35 = sphi 0, %s34
      %s51 = sphi 0, %s35
      %s57 = sphi 0, %s59
      %s60 = sphi 0, %s57
      %s61 = sphi 0, %s60
      %s77 = sphi 0, %s61
      %s81 = sphi 0, %s81
      %s83 = sphi 0, %s81
      %s84 = sphi 0, %s83
      %s98 = sphi 0, %s84
      %s102 = sphi 0, %s102
      %s104 = sphi 0, %s102
      %s105 = sphi 0, %s104
      %s119 = sphi 0, %s105
      %s123 = sphi 0, %s123
      %s125 = sphi 0, %s123
      %s126 = sphi 0, %s125
      %s140 = sphi 0, %s126
      %s144 = sphi 0, %s144
      %s146 = sphi 0, %s144
      %s147 = sphi 0, %s146
      %s161 = sphi 0, %s147
      %s165 = sphi 0, %s165
      %s167 = sphi 0, %s165
      %s168 = sphi 0, %s167
      %s182 = sphi 0, %s168
      %s186 = sphi 0, %s186
      %s188 = sphi 0, %s186
      %s189 = sphi 0, %s188
      %s203 = sphi 0, %s189
      %s207 = sphi 0, %s207
      %s209 = sphi 0, %s207
      %s210 = sphi 0, %s209
      %s224 = sphi 0, %s210
      %s228 = sphi 0, %s228
      %s230 = sphi 0, %s228
      %s231 = sphi 0, %s230
      %s245 = sphi 0, %s231
      %s249 = sphi 0, %s249
      %s251 = sphi 0, %s249
      %s252 = sphi 0, %s251
      %s266 = sphi 0, %s252
      %s270 = sphi 0, %s270
      %s272 = sphi 0, %s270
      %s273 = sphi 0, %s272
      %s287 = sphi 0, %s273
      %s293 = sphi 0, %s295
      %s296 = sphi 0, %s293
      %s297 = sphi 0, %s296
      %s313 = sphi 0, %s297
    $region4: #{bert_dim_pos_extrapol_layer.5} parent=1 // loop_header_branch
      %24 = sbr.rel (%p22) target = $region8
    $region5: #{bert_dim_pos_extrapol_layer.5} parent=1 // loop_body
      %s26 = ssub.s32 %s21, 1
      %s27 = ssub.s32 %s21, 2
      %s28 = sadd.s32 %s21, 1
      %s29 = ssub.s32 %s21, %s28
      %p30 = scmp.eq.s32.totalorder %s29, 0
      %s32 = sadd.s32 %s31, 1
      %s33 = scalar_select %p30, %s31, %s32
      %p36 = pneg %p30
      %p37 = scmp.eq.s32.totalorder %s21, 1
      %p38 = por %p36, %p37
      %p39 = scmp.ne.s32.totalorder %s31, %s34
      %p40 = scmp.eq.s32.totalorder %s21, 0
      %p41 = por %p39, %p40
      %p42 = scmp.ne.s32.totalorder %s31, %s34
      %p43 = scmp.eq.s32.totalorder %s26, 1
      %p44 = por %p42, %p43
      %p45 = scmp.ne.s32.totalorder %s34, %s35
      %p46 = scmp.eq.s32.totalorder %s26, 0
      %p47 = por %p45, %p46
      %p48 = scmp.ne.s32.totalorder %s34, %s35
      %p49 = scmp.eq.s32.totalorder %s27, 1
      %p50 = por %p48, %p49
      %p52 = scmp.ne.s32.totalorder %s35, %s51
      %p53 = scmp.eq.s32.totalorder %s27, 0
      %p54 = por %p52, %p53
      %s55 = ssub.s32 %s21, %s28
      %p56 = scmp.eq.s32.totalorder %s55, 0
      %s58 = sadd.s32 %s57, 1
      %s59 = scalar_select %p56, %s57, %s58
      %p62 = pneg %p56
      %p63 = scmp.eq.s32.totalorder %s21, 1
      %p64 = por %p62, %p63
      %p65 = scmp.ne.s32.totalorder %s57, %s60
      %p66 = scmp.eq.s32.totalorder %s21, 0
      %p67 = por %p65, %p66
      %p68 = scmp.ne.s32.totalorder %s57, %s60
      %p69 = scmp.eq.s32.totalorder %s26, 1
      %p70 = por %p68, %p69
      %p71 = scmp.ne.s32.totalorder %s60, %s61
      %p72 = scmp.eq.s32.totalorder %s26, 0
      %p73 = por %p71, %p72
      %p74 = scmp.ne.s32.totalorder %s60, %s61
      %p75 = scmp.eq.s32.totalorder %s27, 1
      %p76 = por %p74, %p75
      %p78 = scmp.ne.s32.totalorder %s61, %s77
      %p79 = scmp.eq.s32.totalorder %s27, 0
      %p80 = por %p78, %p79
      %s82 = sadd.s32 %s81, 1
      %p85 = scmp.eq.s32.totalorder %s21, 1
      %p86 = scmp.ne.s32.totalorder %s81, %s83
      %p87 = scmp.eq.s32.totalorder %s21, 0
      %p88 = por %p86, %p87
      %p89 = scmp.ne.s32.totalorder %s81, %s83
      %p90 = scmp.eq.s32.totalorder %s26, 1
      %p91 = por %p89, %p90
      %p92 = scmp.ne.s32.totalorder %s83, %s84
      %p93 = scmp.eq.s32.totalorder %s26, 0
      %p94 = por %p92, %p93
      %p95 = scmp.ne.s32.totalorder %s83, %s84
      %p96 = scmp.eq.s32.totalorder %s27, 1
      %p97 = por %p95, %p96
      %p99 = scmp.ne.s32.totalorder %s84, %s98
      %p100 = scmp.eq.s32.totalorder %s27, 0
      %p101 = por %p99, %p100
      %s103 = sadd.s32 %s102, 1
      %p106 = scmp.eq.s32.totalorder %s21, 1
      %p107 = scmp.ne.s32.totalorder %s102, %s104
      %p108 = scmp.eq.s32.totalorder %s21, 0
      %p109 = por %p107, %p108
      %p110 = scmp.ne.s32.totalorder %s102, %s104
      %p111 = scmp.eq.s32.totalorder %s26, 1
      %p112 = por %p110, %p111
      %p113 = scmp.ne.s32.totalorder %s104, %s105
      %p114 = scmp.eq.s32.totalorder %s26, 0
      %p115 = por %p113, %p114
      %p116 = scmp.ne.s32.totalorder %s104, %s105
      %p117 = scmp.eq.s32.totalorder %s27, 1
      %p118 = por %p116, %p117
      %p120 = scmp.ne.s32.totalorder %s105, %s119
      %p121 = scmp.eq.s32.totalorder %s27, 0
      %p122 = por %p120, %p121
      %s124 = sadd.s32 %s123, 1
      %p127 = scmp.eq.s32.totalorder %s21, 1
      %p128 = scmp.ne.s32.totalorder %s123, %s125
      %p129 = scmp.eq.s32.totalorder %s21, 0
      %p130 = por %p128, %p129
      %p131 = scmp.ne.s32.totalorder %s123, %s125
      %p132 = scmp.eq.s32.totalorder %s26, 1
      %p133 = por %p131, %p132
      %p134 = scmp.ne.s32.totalorder %s125, %s126
      %p135 = scmp.eq.s32.totalorder %s26, 0
      %p136 = por %p134, %p135
      %p137 = scmp.ne.s32.totalorder %s125, %s126
      %p138 = scmp.eq.s32.totalorder %s27, 1
      %p139 = por %p137, %p138
      %p141 = scmp.ne.s32.totalorder %s126, %s140
      %p142 = scmp.eq.s32.totalorder %s27, 0
      %p143 = por %p141, %p142
      %s145 = sadd.s32 %s144, 1
      %p148 = scmp.eq.s32.totalorder %s21, 1
      %p149 = scmp.ne.s32.totalorder %s144, %s146
      %p150 = scmp.eq.s32.totalorder %s21, 0
      %p151 = por %p149, %p150
      %p152 = scmp.ne.s32.totalorder %s144, %s146
      %p153 = scmp.eq.s32.totalorder %s26, 1
      %p154 = por %p152, %p153
      %p155 = scmp.ne.s32.totalorder %s146, %s147
      %p156 = scmp.eq.s32.totalorder %s26, 0
      %p157 = por %p155, %p156
      %p158 = scmp.ne.s32.totalorder %s146, %s147
      %p159 = scmp.eq.s32.totalorder %s27, 1
      %p160 = por %p158, %p159
      %p162 = scmp.ne.s32.totalorder %s147, %s161
      %p163 = scmp.eq.s32.totalorder %s27, 0
      %p164 = por %p162, %p163
      %s166 = sadd.s32 %s165, 1
      %p169 = scmp.eq.s32.totalorder %s21, 1
      %p170 = scmp.ne.s32.totalorder %s165, %s167
      %p171 = scmp.eq.s32.totalorder %s21, 0
      %p172 = por %p170, %p171
      %p173 = scmp.ne.s32.totalorder %s165, %s167
      %p174 = scmp.eq.s32.totalorder %s26, 1
      %p175 = por %p173, %p174
      %p176 = scmp.ne.s32.totalorder %s167, %s168
      %p177 = scmp.eq.s32.totalorder %s26, 0
      %p178 = por %p176, %p177
      %p179 = scmp.ne.s32.totalorder %s167, %s168
      %p180 = scmp.eq.s32.totalorder %s27, 1
      %p181 = por %p179, %p180
      %p183 = scmp.ne.s32.totalorder %s168, %s182
      %p184 = scmp.eq.s32.totalorder %s27, 0
      %p185 = por %p183, %p184
      %s187 = sadd.s32 %s186, 1
      %p190 = scmp.eq.s32.totalorder %s21, 1
      %p191 = scmp.ne.s32.totalorder %s186, %s188
      %p192 = scmp.eq.s32.totalorder %s21, 0
      %p193 = por %p191, %p192
      %p194 = scmp.ne.s32.totalorder %s186, %s188
      %p195 = scmp.eq.s32.totalorder %s26, 1
      %p196 = por %p194, %p195
      %p197 = scmp.ne.s32.totalorder %s188, %s189
      %p198 = scmp.eq.s32.totalorder %s26, 0
      %p199 = por %p197, %p198
      %p200 = scmp.ne.s32.totalorder %s188, %s189
      %p201 = scmp.eq.s32.totalorder %s27, 1
      %p202 = por %p200, %p201
      %p204 = scmp.ne.s32.totalorder %s189, %s203
      %p205 = scmp.eq.s32.totalorder %s27, 0
      %p206 = por %p204, %p205
      %s208 = sadd.s32 %s207, 1
      %p211 = scmp.eq.s32.totalorder %s21, 1
      %p212 = scmp.ne.s32.totalorder %s207, %s209
      %p213 = scmp.eq.s32.totalorder %s21, 0
      %p214 = por %p212, %p213
      %p215 = scmp.ne.s32.totalorder %s207, %s209
      %p216 = scmp.eq.s32.totalorder %s26, 1
      %p217 = por %p215, %p216
      %p218 = scmp.ne.s32.totalorder %s209, %s210
      %p219 = scmp.eq.s32.totalorder %s26, 0
      %p220 = por %p218, %p219
      %p221 = scmp.ne.s32.totalorder %s209, %s210
      %p222 = scmp.eq.s32.totalorder %s27, 1
      %p223 = por %p221, %p222
      %p225 = scmp.ne.s32.totalorder %s210, %s224
      %p226 = scmp.eq.s32.totalorder %s27, 0
      %p227 = por %p225, %p226
      %s229 = sadd.s32 %s228, 1
      %p232 = scmp.eq.s32.totalorder %s21, 1
      %p233 = scmp.ne.s32.totalorder %s228, %s230
      %p234 = scmp.eq.s32.totalorder %s21, 0
      %p235 = por %p233, %p234
      %p236 = scmp.ne.s32.totalorder %s228, %s230
      %p237 = scmp.eq.s32.totalorder %s26, 1
      %p238 = por %p236, %p237
      %p239 = scmp.ne.s32.totalorder %s230, %s231
      %p240 = scmp.eq.s32.totalorder %s26, 0
      %p241 = por %p239, %p240
      %p242 = scmp.ne.s32.totalorder %s230, %s231
      %p243 = scmp.eq.s32.totalorder %s27, 1
      %p244 = por %p242, %p243
      %p246 = scmp.ne.s32.totalorder %s231, %s245
      %p247 = scmp.eq.s32.totalorder %s27, 0
      %p248 = por %p246, %p247
      %s250 = sadd.s32 %s249, 1
      %p253 = scmp.eq.s32.totalorder %s21, 1
      %p254 = scmp.ne.s32.totalorder %s249, %s251
      %p255 = scmp.eq.s32.totalorder %s21, 0
      %p256 = por %p254, %p255
      %p257 = scmp.ne.s32.totalorder %s249, %s251
      %p258 = scmp.eq.s32.totalorder %s26, 1
      %p259 = por %p257, %p258
      %p260 = scmp.ne.s32.totalorder %s251, %s252
      %p261 = scmp.eq.s32.totalorder %s26, 0
      %p262 = por %p260, %p261
      %p263 = scmp.ne.s32.totalorder %s251, %s252
      %p264 = scmp.eq.s32.totalorder %s27, 1
      %p265 = por %p263, %p264
      %p267 = scmp.ne.s32.totalorder %s252, %s266
      %p268 = scmp.eq.s32.totalorder %s27, 0
      %p269 = por %p267, %p268
      %s271 = sadd.s32 %s270, 1
      %p274 = scmp.eq.s32.totalorder %s21, 1
      %p275 = scmp.ne.s32.totalorder %s270, %s272
      %p276 = scmp.eq.s32.totalorder %s21, 0
      %p277 = por %p275, %p276
      %p278 = scmp.ne.s32.totalorder %s270, %s272
      %p279 = scmp.eq.s32.totalorder %s26, 1
      %p280 = por %p278, %p279
      %p281 = scmp.ne.s32.totalorder %s272, %s273
      %p282 = scmp.eq.s32.totalorder %s26, 0
      %p283 = por %p281, %p282
      %p284 = scmp.ne.s32.totalorder %s272, %s273
      %p285 = scmp.eq.s32.totalorder %s27, 1
      %p286 = por %p284, %p285
      %p288 = scmp.ne.s32.totalorder %s273, %s287
      %p289 = scmp.eq.s32.totalorder %s27, 0
      %p290 = por %p288, %p289
      %s291 = ssub.s32 %s21, %s28
      %p292 = scmp.eq.s32.totalorder %s291, 0
      %s294 = sadd.s32 %s293, 1
      %s295 = scalar_select %p292, %s293, %s294
      %p298 = pneg %p292
      %p299 = scmp.eq.s32.totalorder %s21, 1
      %p300 = por %p298, %p299
      %p301 = scmp.ne.s32.totalorder %s293, %s296
      %p302 = scmp.eq.s32.totalorder %s21, 0
      %p303 = por %p301, %p302
      %p304 = scmp.ne.s32.totalorder %s293, %s296
      %p305 = scmp.eq.s32.totalorder %s26, 1
      %p306 = por %p304, %p305
      %p307 = scmp.ne.s32.totalorder %s296, %s297
      %p308 = scmp.eq.s32.totalorder %s26, 0
      %p309 = por %p307, %p308
      %p310 = scmp.ne.s32.totalorder %s296, %s297
      %p311 = scmp.eq.s32.totalorder %s27, 1
      %p312 = por %p310, %p311
      %p314 = scmp.ne.s32.totalorder %s297, %s313
      %p315 = scmp.eq.s32.totalorder %s27, 0
      %p316 = por %p314, %p315
      %p317 = scmp.le.s32.totalorder 1, %s21
      %p318 = scmp.lt.s32.totalorder %s21, 3
      %p319 = pnand %p317, %p318
      %p320 = pneg %p319
      // Predicated region
      $region9: #{bert_dim_pos_extrapol_layer.5} parent=5 // pred_check
        _
      $region10: #{bert_dim_pos_extrapol_layer.5} parent=5 // pred_check_branch
        %322 = sbr.rel (%p319) target = $region12
      $region11: #{bert_dim_pos_extrapol_layer.5} parent=5 // pred_region
        %s323 = ssub.s32 %s21, 1
        // Predicated region
        $region13: #{bert_dim_pos_extrapol_layer.5} parent=11 // pred_check
          %p324 = pneg %p94
        $region14: #{bert_dim_pos_extrapol_layer.5} parent=11 // pred_check_branch
          %326 = sbr.rel (%p324) target = $region16
        $region15: #{bert_dim_pos_extrapol_layer.5} parent=11 // pred_region
          _
        $region16: #{bert_dim_pos_extrapol_layer.5} parent=11 // pred_fallthru
          _
        // Predicated region
        $region17: #{bert_dim_pos_extrapol_layer.5} parent=11 // pred_check
          %p327 = pneg %p115
        $region18: #{bert_dim_pos_extrapol_layer.5} parent=11 // pred_check_branch
          %329 = sbr.rel (%p327) target = $region20
        $region19: #{bert_dim_pos_extrapol_layer.5} parent=11 // pred_region
          _
        $region20: #{bert_dim_pos_extrapol_layer.5} parent=11 // pred_fallthru
          _
        // Predicated region
        $region21: #{bert_dim_pos_extrapol_layer.5} parent=11 // pred_check
          %p330 = pneg %p136
        $region22: #{bert_dim_pos_extrapol_layer.5} parent=11 // pred_check_branch
          %332 = sbr.rel (%p330) target = $region24
        $region23: #{bert_dim_pos_extrapol_layer.5} parent=11 // pred_region
          _
        $region24: #{bert_dim_pos_extrapol_layer.5} parent=11 // pred_fallthru
          _
        // Predicated region
        $region25: #{bert_dim_pos_extrapol_layer.5} parent=11 // pred_check
          %p333 = pneg %p157
        $region26: #{bert_dim_pos_extrapol_layer.5} parent=11 // pred_check_branch
          %335 = sbr.rel (%p333) target = $region28
        $region27: #{bert_dim_pos_extrapol_layer.5} parent=11 // pred_region
          _
        $region28: #{bert_dim_pos_extrapol_layer.5} parent=11 // pred_fallthru
          _
        // Predicated region
        $region29: #{bert_dim_pos_extrapol_layer.5} parent=11 // pred_check
          %p336 = pneg %p178
        $region30: #{bert_dim_pos_extrapol_layer.5} parent=11 // pred_check_branch
          %338 = sbr.rel (%p336) target = $region32
        $region31: #{bert_dim_pos_extrapol_layer.5} parent=11 // pred_region
          _
        $region32: #{bert_dim_pos_extrapol_layer.5} parent=11 // pred_fallthru
          _
        // Predicated region
        $region33: #{bert_dim_pos_extrapol_layer.5} parent=11 // pred_check
          %p339 = pneg %p199
        $region34: #{bert_dim_pos_extrapol_layer.5} parent=11 // pred_check_branch
          %341 = sbr.rel (%p339) target = $region36
        $region35: #{bert_dim_pos_extrapol_layer.5} parent=11 // pred_region
          _
        $region36: #{bert_dim_pos_extrapol_layer.5} parent=11 // pred_fallthru
          _
        // Predicated region
        $region37: #{bert_dim_pos_extrapol_layer.5} parent=11 // pred_check
          %p342 = pneg %p220
        $region38: #{bert_dim_pos_extrapol_layer.5} parent=11 // pred_check_branch
          %344 = sbr.rel (%p342) target = $region40
        $region39: #{bert_dim_pos_extrapol_layer.5} parent=11 // pred_region
          _
        $region40: #{bert_dim_pos_extrapol_layer.5} parent=11 // pred_fallthru
          _
        // Predicated region
        $region41: #{bert_dim_pos_extrapol_layer.5} parent=11 // pred_check
          %p345 = pneg %p241
        $region42: #{bert_dim_pos_extrapol_layer.5} parent=11 // pred_check_branch
          %347 = sbr.rel (%p345) target = $region44
        $region43: #{bert_dim_pos_extrapol_layer.5} parent=11 // pred_region
          _
        $region44: #{bert_dim_pos_extrapol_layer.5} parent=11 // pred_fallthru
          _
        // Predicated region
        $region45: #{bert_dim_pos_extrapol_layer.5} parent=11 // pred_check
          %p348 = pneg %p262
        $region46: #{bert_dim_pos_extrapol_layer.5} parent=11 // pred_check_branch
          %350 = sbr.rel (%p348) target = $region48
        $region47: #{bert_dim_pos_extrapol_layer.5} parent=11 // pred_region
          _
        $region48: #{bert_dim_pos_extrapol_layer.5} parent=11 // pred_fallthru
          _
        // Predicated region
        $region49: #{bert_dim_pos_extrapol_layer.5} parent=11 // pred_check
          %p351 = pneg %p283
        $region50: #{bert_dim_pos_extrapol_layer.5} parent=11 // pred_check_branch
          %353 = sbr.rel (%p351) target = $region52
        $region51: #{bert_dim_pos_extrapol_layer.5} parent=11 // pred_region
          _
        $region52: #{bert_dim_pos_extrapol_layer.5} parent=11 // pred_fallthru
          _
      $region12: #{bert_dim_pos_extrapol_layer.5} parent=5 // pred_fallthru
        _
      %p354 = scmp.lt.s32.totalorder %s21, 2
      // Predicated region
      $region53: #{bert_dim_pos_extrapol_layer.5} parent=5 // pred_check
        %p355 = pneg %p354
      $region54: #{bert_dim_pos_extrapol_layer.5} parent=5 // pred_check_branch
        %357 = sbr.rel (%p355) target = $region56
      $region55: #{bert_dim_pos_extrapol_layer.5} parent=5 // pred_region
        // Predicated region
        $region57: #{bert_dim_pos_extrapol_layer.5} parent=55 // pred_check
          %p358 = pneg %p41
        $region58: #{bert_dim_pos_extrapol_layer.5} parent=55 // pred_check_branch
          %360 = sbr.rel (%p358) target = $region60
        $region59: #{bert_dim_pos_extrapol_layer.5} parent=55 // pred_region
          %p361 = scmp.lt.s32.totalorder %s21, 1
          %s362 = scalar_select %p361, %s21, 1
          %s363 = smul.addr %s362, 8
          %s364 = scalar_lea.vmem %s0, %s363
        $region60: #{bert_dim_pos_extrapol_layer.5} parent=55 // pred_fallthru
          _
        // Predicated region
        $region61: #{bert_dim_pos_extrapol_layer.5} parent=55 // pred_check
          %p365 = pneg %p67
        $region62: #{bert_dim_pos_extrapol_layer.5} parent=55 // pred_check_branch
          %367 = sbr.rel (%p365) target = $region64
        $region63: #{bert_dim_pos_extrapol_layer.5} parent=55 // pred_region
          %p368 = scmp.lt.s32.totalorder %s21, 1
          %s369 = scalar_select %p368, %s21, 1
          %s370 = smul.addr %s369, 8
          %s371 = scalar_lea.vmem %s1, %s370
        $region64: #{bert_dim_pos_extrapol_layer.5} parent=55 // pred_fallthru
          _
      $region56: #{bert_dim_pos_extrapol_layer.5} parent=5 // pred_fallthru
        _
      %p372 = scmp.le.s32.totalorder 1, %s21
      %p373 = scmp.lt.s32.totalorder %s21, 3
      %p374 = pnand %p372, %p373
      %p375 = pneg %p374
      // Predicated region
      $region65: #{bert_dim_pos_extrapol_layer.5} parent=5 // pred_check
        _
      $region66: #{bert_dim_pos_extrapol_layer.5} parent=5 // pred_check_branch
        %377 = sbr.rel (%p374) target = $region68
      $region67: #{bert_dim_pos_extrapol_layer.5} parent=5 // pred_region
        %s378 = ssub.s32 %s21, 1
        %p379 = scmp.lt.s32.totalorder %s26, 1
        %s380 = scalar_select %p379, %s26, 1
        %s381 = smul.addr %s380, 8
        %s382 = scalar_lea.vmem %s0, %s381
        %p383 = pneg %p47
        %p384 = pneg %p44
        %p385 = scmp.lt.s32.totalorder %s26, 1
        %s386 = scalar_select %p385, %s26, 1
        %s387 = smul.addr %s386, 8
        %s388 = scalar_lea.vmem %s1, %s387
        %p389 = pneg %p73
        %p390 = pneg %p70
        %p391 = pneg %p94
        %p392 = pneg %p91
        %p393 = pneg %p115
        %p394 = pneg %p112
        %p395 = pneg %p136
        %p396 = pneg %p133
        %p397 = pneg %p157
        %p398 = pneg %p154
        %p399 = pneg %p178
        %p400 = pneg %p175
        %p401 = pneg %p199
        %p402 = pneg %p196
        %p403 = pneg %p220
        %p404 = pneg %p217
        %p405 = pneg %p241
        %p406 = pneg %p238
        %p407 = pneg %p262
        %p408 = pneg %p259
        %p409 = pneg %p283
        %p410 = pneg %p280
        %p411 = pneg %p309
        %p412 = pneg %p306
        %s413 = sand.u32 %s296, 1
        %s414 = scalar_lea.sflag [#allocation3], %s413
        %s415 = sand.u32 %s296, 1
        %s416 = smul.addr %s415, 8
        %s417 = scalar_lea.vmem [#allocation2], %s416
        %p418 = scmp.lt.s32.totalorder %s26, 1
        %s419 = scalar_select %p418, %s26, 1
        %s420 = smul.addr %s419, 8
        %s421 = scalar_lea.vmem %s0, %s420
        %p422 = scmp.lt.s32.totalorder %s26, 1
        %s423 = scalar_select %p422, %s26, 1
        %s424 = smul.addr %s423, 8
        %s425 = scalar_lea.vmem %s1, %s424
        %v426 = vld [vmem:[%s421] sm:$0xff]
        %v427 = vld [vmem:[%s2] sm:$0xff]
        %v428 = vld [vmem:[%s2 + $0x8] sm:$0xff]
        %v429 = vld [vmem:[%s2 + $0x10] sm:$0xff]
        %v430 = vld [vmem:[%s2 + $0x18] sm:$0xff]
        %v431 = vld [vmem:[%s3] sm:$0x1]
        %v433 = vlaneseq
        %v434 = vshrl.u32 %v433, 7
        %v435 = vsub.s32 0, %v434
        %v436 = vrot.slane %v431, %v435
        %vm438 = vcmask 261120
        %v440 = vsel %vm438, %v426, 0
        %442 = vmatprep.subr.mxu0 0.0
        %443 = vmatpush1.msra.mxu0 %v427
        %444 = vmatprep.subr.mxu0 0.0
        %445 = vmatpush1.msra.mxu0 %v428
        %446 = vmatprep.subr.mxu0 0.0
        %447 = vmatpush1.msra.mxu0 %v429
        %448 = vmatprep.subr.mxu0 0.0
        %449 = vmatpush1.msra.mxu0 %v430
        %450 = vmatprep.subr.mxu0 0.0
        %451 = vmatpush1.msra.mxu0 0.0
        %452 = vmatprep.subr.mxu0 0.0
        %453 = vmatpush1.msra.mxu0 0.0
        %454 = vmatprep.subr.mxu0 0.0
        %455 = vmatpush1.msra.mxu0 0.0
        %456 = vmatprep.subr.mxu0 0.0
        %457 = vmatpush1.msra.mxu0 0.0
        %458 = vmatprep.subr.mxu0 0.0
        %459 = vmatpush1.msra.mxu0 0.0
        %460 = vmatprep.subr.mxu0 0.0
        %461 = vmatpush1.msra.mxu0 0.0
        %462 = vmatprep.subr.mxu0 0.0
        %463 = vmatpush1.msra.mxu0 0.0
        %464 = vmatprep.subr.mxu0 0.0
        %465 = vmatpush1.msra.mxu0 0.0
        %466 = vmatprep.subr.mxu0 0.0
        %467 = vmatpush1.msra.mxu0 0.0
        %468 = vmatprep.subr.mxu0 0.0
        %469 = vmatpush1.msra.mxu0 0.0
        %470 = vmatprep.subr.mxu0 0.0
        %471 = vmatpush1.msra.mxu0 0.0
        %472 = vmatprep.subr.mxu0 0.0
        %473 = vmatpush1.msra.mxu0 0.0
        %474 = vmatprep.subr.mxu0 0.0
        %475 = vmatpush1.msra.mxu0 0.0
        %476 = vmatprep.subr.mxu0 0.0
        %477 = vmatpush1.msra.mxu0 0.0
        %478 = vmatprep.subr.mxu0 0.0
        %479 = vmatpush1.msra.mxu0 0.0
        %480 = vmatprep.subr.mxu0 0.0
        %481 = vmatpush1.msra.mxu0 0.0
        %482 = vmatprep.subr.mxu0 0.0
        %483 = vmatpush1.msra.mxu0 0.0
        %484 = vmatprep.subr.mxu0 0.0
        %485 = vmatpush1.msra.mxu0 0.0
        %486 = vmatprep.subr.mxu0 0.0
        %487 = vmatpush1.msra.mxu0 0.0
        %488 = vmatprep.subr.mxu0 0.0
        %489 = vmatpush1.msra.mxu0 0.0
        %490 = vmatprep.subr.mxu0 0.0
        %491 = vmatpush1.msra.mxu0 0.0
        %492 = vmatprep.subr.mxu0 0.0
        %493 = vmatpush1.msra.mxu0 0.0
        %494 = vmatprep.subr.mxu0 0.0
        %495 = vmatpush1.msra.mxu0 0.0
        %496 = vmatprep.subr.mxu0 0.0
        %497 = vmatpush1.msra.mxu0 0.0
        %498 = vmatprep.subr.mxu0 0.0
        %499 = vmatpush1.msra.mxu0 0.0
        %500 = vmatprep.subr.mxu0 0.0
        %501 = vmatpush1.msra.mxu0 0.0
        %502 = vmatprep.subr.mxu0 0.0
        %503 = vmatpush1.msra.mxu0 0.0
        %504 = vmatprep.subr.mxu0 0.0
        %505 = vmatpush1.msra.mxu0 0.0
        %506 = vmatprep.mubr.f32.mxu0 0.0
        %507 = vmatmul.mubr.f32.gmra.mrb[0].mxu0 %v440
        %v508 = vpop.f32.mrb[0].mxu0
        %v509 = vadd.f32 %v436, %v508
        %v510 = vpop.f32.mrb[0].mxu0
        %511 = vdwg.mxu0
        %v512 = vld [vmem:[%s425] sm:$0xff]
        %v513 = vadd.f32 %v509, %v512
        %v514 = vld [vmem:[%s4] sm:$0x1]
        %v515 = vld [vmem:[%s5] sm:$0x1]
        %v516 = vsel %vm438, %v513, 0.0
        %517 = vadd.xlane.f32.xlu0 %v516
        %v518 = vpop.xlane.xlu0 %517
        %v519 = vrcp.pop 32.0
        %v520 = vmul.f32 %v518, %v519
        %v521 = vsub.f32 %v513, %v520
        %v522 = vmul.f32 %v521, %v521
        %v523 = vsel %vm438, %v522, 0.0
        %524 = vadd.xlane.f32.xlu0 %v523
        %v525 = vpop.xlane.xlu0 %524
        %v526 = vmul.f32 %v525, %v519
        %v527 = vadd.f32 %v526, 1e-12
        %v528 = vrsqrt.pop %v527
        %v529 = vmul.f32 %v521, %v528
        %v531 = vlaneseq
        %v532 = vshrl.u32 %v531, 7
        %v533 = vsub.s32 0, %v532
        %v534 = vrot.slane %v514, %v533
        %v536 = vmul.f32 %v529, %v534
        %v538 = vlaneseq
        %v539 = vshrl.u32 %v538, 7
        %v540 = vsub.s32 0, %v539
        %v541 = vrot.slane %v515, %v540
        %v543 = vadd.f32 %v536, %v541
        %v544 = vld [vmem:[%s6] sm:$0xff]
        %v545 = vld [vmem:[%s6 + $0x8] sm:$0xff]
        %v546 = vld [vmem:[%s6 + $0x10] sm:$0xff]
        %v547 = vld [vmem:[%s6 + $0x18] sm:$0xff]
        %v548 = vld [vmem:[%s7] sm:$0x1]
        %v550 = vlaneseq
        %v551 = vshrl.u32 %v550, 7
        %v552 = vsub.s32 0, %v551
        %v553 = vrot.slane %v548, %v552
        %v556 = vsel %vm438, %v543, 0
        %558 = vmatprep.subr.mxu0 0.0
        %559 = vmatpush1.msra.mxu0 %v544
        %560 = vmatprep.subr.mxu0 0.0
        %561 = vmatpush1.msra.mxu0 %v545
        %562 = vmatprep.subr.mxu0 0.0
        %563 = vmatpush1.msra.mxu0 %v546
        %564 = vmatprep.subr.mxu0 0.0
        %565 = vmatpush1.msra.mxu0 %v547
        %566 = vmatprep.subr.mxu0 0.0
        %567 = vmatpush1.msra.mxu0 0.0
        %568 = vmatprep.subr.mxu0 0.0
        %569 = vmatpush1.msra.mxu0 0.0
        %570 = vmatprep.subr.mxu0 0.0
        %571 = vmatpush1.msra.mxu0 0.0
        %572 = vmatprep.subr.mxu0 0.0
        %573 = vmatpush1.msra.mxu0 0.0
        %574 = vmatprep.subr.mxu0 0.0
        %575 = vmatpush1.msra.mxu0 0.0
        %576 = vmatprep.subr.mxu0 0.0
        %577 = vmatpush1.msra.mxu0 0.0
        %578 = vmatprep.subr.mxu0 0.0
        %579 = vmatpush1.msra.mxu0 0.0
        %580 = vmatprep.subr.mxu0 0.0
        %581 = vmatpush1.msra.mxu0 0.0
        %582 = vmatprep.subr.mxu0 0.0
        %583 = vmatpush1.msra.mxu0 0.0
        %584 = vmatprep.subr.mxu0 0.0
        %585 = vmatpush1.msra.mxu0 0.0
        %586 = vmatprep.subr.mxu0 0.0
        %587 = vmatpush1.msra.mxu0 0.0
        %588 = vmatprep.subr.mxu0 0.0
        %589 = vmatpush1.msra.mxu0 0.0
        %590 = vmatprep.subr.mxu0 0.0
        %591 = vmatpush1.msra.mxu0 0.0
        %592 = vmatprep.subr.mxu0 0.0
        %593 = vmatpush1.msra.mxu0 0.0
        %594 = vmatprep.subr.mxu0 0.0
        %595 = vmatpush1.msra.mxu0 0.0
        %596 = vmatprep.subr.mxu0 0.0
        %597 = vmatpush1.msra.mxu0 0.0
        %598 = vmatprep.subr.mxu0 0.0
        %599 = vmatpush1.msra.mxu0 0.0
        %600 = vmatprep.subr.mxu0 0.0
        %601 = vmatpush1.msra.mxu0 0.0
        %602 = vmatprep.subr.mxu0 0.0
        %603 = vmatpush1.msra.mxu0 0.0
        %604 = vmatprep.subr.mxu0 0.0
        %605 = vmatpush1.msra.mxu0 0.0
        %606 = vmatprep.subr.mxu0 0.0
        %607 = vmatpush1.msra.mxu0 0.0
        %608 = vmatprep.subr.mxu0 0.0
        %609 = vmatpush1.msra.mxu0 0.0
        %610 = vmatprep.subr.mxu0 0.0
        %611 = vmatpush1.msra.mxu0 0.0
        %612 = vmatprep.subr.mxu0 0.0
        %613 = vmatpush1.msra.mxu0 0.0
        %614 = vmatprep.subr.mxu0 0.0
        %615 = vmatpush1.msra.mxu0 0.0
        %616 = vmatprep.subr.mxu0 0.0
        %617 = vmatpush1.msra.mxu0 0.0
        %618 = vmatprep.subr.mxu0 0.0
        %619 = vmatpush1.msra.mxu0 0.0
        %620 = vmatprep.subr.mxu0 0.0
        %621 = vmatpush1.msra.mxu0 0.0
        %622 = vmatprep.mubr.f32.mxu0 0.0
        %623 = vmatmul.mubr.f32.gmra.mrb[0].mxu0 %v556
        %v624 = vpop.f32.mrb[0].mxu0
        %v625 = vadd.f32 %v553, %v624
        %v626 = vpop.f32.mrb[0].mxu0
        %627 = vdwg.mxu0
        %v628 = vmul.f32 %v625, 0.5
        %v629 = vmul.f32 %v625, 0.70710677
        %v630 = vand.u32 2147483647, %v629
        %v631 = vmul.f32 %v630, 0.3275911
        %v632 = vadd.f32 %v631, 1.0
        %v633 = vrcp.pop %v632
        %v634 = vmul.f32 1.0, %v633
        %v635 = vmul.f32 %v634, 1.0614054
        %v636 = vadd.f32 %v635, -1.4531521
        %v637 = vmul.f32 %v634, %v636
        %v638 = vadd.f32 %v637, 1.4214138
        %v639 = vmul.f32 %v634, %v638
        %v640 = vadd.f32 %v639, -0.28449672
        %v641 = vmul.f32 %v634, %v640
        %v642 = vadd.f32 %v641, 0.2548296
        %v643 = vmul.f32 %v634, %v642
        %v644 = vsub.f32 0.0, %v630
        %v645 = vmul.f32 %v644, %v630
        %v646 = vmul.f32 %v645, 1.442695
        %v647 = vpow.pop %v646
        %v648 = vmul.f32 %v643, %v647
        %v649 = vsub.f32 1.0, %v648
        %vm650 = vcmp.ge.f32.partialorder %v629, 0.0
        %v651 = vsub.f32 0.0, %v649
        %v652 = vsel %vm650, %v649, %v651
        %v653 = vadd.f32 %v652, 1.0
        %v654 = vmul.f32 %v628, %v653
        %v655 = vld [vmem:[%s8] sm:$0xff]
        %v656 = vld [vmem:[%s8 + $0x8] sm:$0xff]
        %v657 = vld [vmem:[%s8 + $0x10] sm:$0xff]
        %v658 = vld [vmem:[%s8 + $0x18] sm:$0xff]
        %v659 = vld [vmem:[%s8 + $0x20] sm:$0xff]
        %v660 = vld [vmem:[%s8 + $0x28] sm:$0xff]
        %v661 = vld [vmem:[%s8 + $0x30] sm:$0xff]
        %v662 = vld [vmem:[%s8 + $0x38] sm:$0xff]
        %v663 = vld [vmem:[%s8 + $0x40] sm:$0xff]
        %v664 = vld [vmem:[%s8 + $0x48] sm:$0xff]
        %v665 = vld [vmem:[%s8 + $0x50] sm:$0xff]
        %v666 = vld [vmem:[%s8 + $0x58] sm:$0xff]
        %v667 = vld [vmem:[%s8 + $0x60] sm:$0xff]
        %v668 = vld [vmem:[%s8 + $0x68] sm:$0xff]
        %v669 = vld [vmem:[%s8 + $0x70] sm:$0xff]
        %v670 = vld [vmem:[%s8 + $0x78] sm:$0xff]
        %v671 = vld [vmem:[%s9] sm:$0x1]
        %v673 = vlaneseq
        %v674 = vshrl.u32 %v673, 7
        %v675 = vsub.s32 0, %v674
        %v676 = vrot.slane %v671, %v675
        %678 = vmatprep.subr.mxu0 0.0
        %679 = vmatpush1.msra.mxu0 %v655
        %680 = vmatprep.subr.mxu0 0.0
        %681 = vmatpush1.msra.mxu0 %v656
        %682 = vmatprep.subr.mxu0 0.0
        %683 = vmatpush1.msra.mxu0 %v657
        %684 = vmatprep.subr.mxu0 0.0
        %685 = vmatpush1.msra.mxu0 %v658
        %686 = vmatprep.subr.mxu0 0.0
        %687 = vmatpush1.msra.mxu0 %v659
        %688 = vmatprep.subr.mxu0 0.0
        %689 = vmatpush1.msra.mxu0 %v660
        %690 = vmatprep.subr.mxu0 0.0
        %691 = vmatpush1.msra.mxu0 %v661
        %692 = vmatprep.subr.mxu0 0.0
        %693 = vmatpush1.msra.mxu0 %v662
        %694 = vmatprep.subr.mxu0 0.0
        %695 = vmatpush1.msra.mxu0 %v663
        %696 = vmatprep.subr.mxu0 0.0
        %697 = vmatpush1.msra.mxu0 %v664
        %698 = vmatprep.subr.mxu0 0.0
        %699 = vmatpush1.msra.mxu0 %v665
        %700 = vmatprep.subr.mxu0 0.0
        %701 = vmatpush1.msra.mxu0 %v666
        %702 = vmatprep.subr.mxu0 0.0
        %703 = vmatpush1.msra.mxu0 %v667
        %704 = vmatprep.subr.mxu0 0.0
        %705 = vmatpush1.msra.mxu0 %v668
        %706 = vmatprep.subr.mxu0 0.0
        %707 = vmatpush1.msra.mxu0 %v669
        %708 = vmatprep.subr.mxu0 0.0
        %709 = vmatpush1.msra.mxu0 %v670
        %710 = vmatprep.subr.mxu0 0.0
        %711 = vmatpush1.msra.mxu0 0.0
        %712 = vmatprep.subr.mxu0 0.0
        %713 = vmatpush1.msra.mxu0 0.0
        %714 = vmatprep.subr.mxu0 0.0
        %715 = vmatpush1.msra.mxu0 0.0
        %716 = vmatprep.subr.mxu0 0.0
        %717 = vmatpush1.msra.mxu0 0.0
        %718 = vmatprep.subr.mxu0 0.0
        %719 = vmatpush1.msra.mxu0 0.0
        %720 = vmatprep.subr.mxu0 0.0
        %721 = vmatpush1.msra.mxu0 0.0
        %722 = vmatprep.subr.mxu0 0.0
        %723 = vmatpush1.msra.mxu0 0.0
        %724 = vmatprep.subr.mxu0 0.0
        %725 = vmatpush1.msra.mxu0 0.0
        %726 = vmatprep.subr.mxu0 0.0
        %727 = vmatpush1.msra.mxu0 0.0
        %728 = vmatprep.subr.mxu0 0.0
        %729 = vmatpush1.msra.mxu0 0.0
        %730 = vmatprep.subr.mxu0 0.0
        %731 = vmatpush1.msra.mxu0 0.0
        %732 = vmatprep.subr.mxu0 0.0
        %733 = vmatpush1.msra.mxu0 0.0
        %734 = vmatprep.subr.mxu0 0.0
        %735 = vmatpush1.msra.mxu0 0.0
        %736 = vmatprep.subr.mxu0 0.0
        %737 = vmatpush1.msra.mxu0 0.0
        %738 = vmatprep.subr.mxu0 0.0
        %739 = vmatpush1.msra.mxu0 0.0
        %740 = vmatprep.subr.mxu0 0.0
        %741 = vmatpush1.msra.mxu0 0.0
        %742 = vmatprep.mubr.f32.mxu0 0.0
        %743 = vmatmul.mubr.f32.gmra.mrb[0].mxu0 %v654
        %v744 = vpop.f32.mrb[0].mxu0
        %v745 = vadd.f32 %v676, %v744
        %v746 = vpop.f32.mrb[0].mxu0
        %747 = vdwg.mxu0
        %v748 = vadd.f32 %v745, %v543
        %v749 = vld [vmem:[%s10] sm:$0x1]
        %v750 = vld [vmem:[%s11] sm:$0x1]
        %v751 = vsel %vm438, %v748, 0.0
        %752 = vadd.xlane.f32.xlu0 %v751
        %v753 = vpop.xlane.xlu0 %752
        %v754 = vmul.f32 %v753, %v519
        %v755 = vsub.f32 %v748, %v754
        %v756 = vmul.f32 %v755, %v755
        %v757 = vsel %vm438, %v756, 0.0
        %758 = vadd.xlane.f32.xlu0 %v757
        %v759 = vpop.xlane.xlu0 %758
        %v760 = vmul.f32 %v759, %v519
        %v761 = vadd.f32 %v760, 1e-12
        %v762 = vrsqrt.pop %v761
        %v763 = vmul.f32 %v755, %v762
        %v765 = vlaneseq
        %v766 = vshrl.u32 %v765, 7
        %v767 = vsub.s32 0, %v766
        %v768 = vrot.slane %v749, %v767
        %v770 = vmul.f32 %v763, %v768
        %v772 = vlaneseq
        %v773 = vshrl.u32 %v772, 7
        %v774 = vsub.s32 0, %v773
        %v775 = vrot.slane %v750, %v774
        %v777 = vadd.f32 %v770, %v775
        %778 = vst.msk [vmem:[%s417] sm:$0xff] %vm438, %v777
        %s779 = sand.u32 %s296, 1
        %s780 = scalar_lea.sflag [#allocation3], %s779
        %s781 = sand.u32 %s296, 1
        %s782 = smul.addr %s781, 8
        %s783 = scalar_lea.vmem [#allocation2], %s782
        // Predicated region
        $region69: #{bert_dim_pos_extrapol_layer.5} parent=67 // pred_check
          %p784 = pneg %p306
        $region70: #{bert_dim_pos_extrapol_layer.5} parent=67 // pred_check_branch
          %786 = sbr.rel (%p784) target = $region72
        $region71: #{bert_dim_pos_extrapol_layer.5} parent=67 // pred_region
          %s788 = ssub.s32 128, 128
          %789 = vsyncadd %s780, %s788
          %s790 = smul.addr %s26, 128
          %s791 = scalar_lea.hbm %s12, %s790
          %s793 = sshll.u32 %s783, 4
          %s794 = int_to_ptr.vmem [resolvable:$true] %s793
          %796 = dma.vmem_to_hbm [thread:$0]  %s794, 128, %s791, %s780
        $region72: #{bert_dim_pos_extrapol_layer.5} parent=67 // pred_fallthru
          _
      $region68: #{bert_dim_pos_extrapol_layer.5} parent=5 // pred_fallthru
        _
      %p797 = scmp.le.s32.totalorder 2, %s21
      // Predicated region
      $region73: #{bert_dim_pos_extrapol_layer.5} parent=5 // pred_check
        %p798 = pneg %p797
      $region74: #{bert_dim_pos_extrapol_layer.5} parent=5 // pred_check_branch
        %800 = sbr.rel (%p798) target = $region76
      $region75: #{bert_dim_pos_extrapol_layer.5} parent=5 // pred_region
        %s801 = ssub.s32 %s21, 2
        // Predicated region
        $region77: #{bert_dim_pos_extrapol_layer.5} parent=75 // pred_check
          %p802 = pneg %p312
        $region78: #{bert_dim_pos_extrapol_layer.5} parent=75 // pred_check_branch
          %804 = sbr.rel (%p802) target = $region80
        $region79: #{bert_dim_pos_extrapol_layer.5} parent=75 // pred_region
          %s805 = sand.u32 %s297, 1
          %s806 = scalar_lea.sflag [#allocation3], %s805
          %s807 = sand.u32 %s297, 1
          %s808 = smul.addr %s807, 8
          %s809 = scalar_lea.vmem [#allocation2], %s808
          %810 = dma.done %s806, 128
        $region80: #{bert_dim_pos_extrapol_layer.5} parent=75 // pred_fallthru
          _
      $region76: #{bert_dim_pos_extrapol_layer.5} parent=5 // pred_fallthru
        _
    $region6: #{bert_dim_pos_extrapol_layer.5} parent=1 // loop_footer
      %s25 = sadd.s32 1, %s21
    $region7: #{bert_dim_pos_extrapol_layer.5} parent=1 // loop_footer_branch
      %20 = sbr.rel target = $region3
    $region8: #{bert_dim_pos_extrapol_layer.5} parent=1 // loop_exit
      _
    %811 = vsyncpa [#allocation3], 1
    %s812 = scalar_lea.sflag [#allocation3], 1
    %813 = vsyncpa %s812, 1

// kernel: bert_dim_pos_extrapol_layer.4
$region0: #{bert_dim_pos_extrapol_layer.4}
  #allocation0 [shape = 'u32[]', space=smem, size = 0x4, offset = 0x4, fixed_abs, tag = 'smem constant byte address 0x4 - core index']
  #allocation1 [shape = 'u32[144,128]{1,0:T(1,128)}', space=vmem, size = 0x12000, scoped, tag = 'internal scratch']
  %s0 = inlined_call_operand.vmem [shape: f32[2,8,32], index: 0, kind: input, shape index: {}]
  %s1 = inlined_call_operand.vmem [shape: f32[2,8,32], index: 1, kind: input, shape index: {}]
  %s2 = inlined_call_operand.vmem [shape: f32[2,8,32], index: 2, kind: input, shape index: {}]
  %s3 = inlined_call_operand.vmem [shape: f32[2,8,32], index: 3, kind: output, shape index: {}]
  %s4 = sld [smem:[#allocation0]]
  $region45: #{bert_dim_pos_extrapol_layer.4} parent=0
    _
  %s6 = ssub.s32 1, %s4
  %s7 = scalar_select 0, %s6, %s4
  loop: start=0, step=1, limit=4
  $region2: #{bert_dim_pos_extrapol_layer.4} parent=0 // loop_pre_header
    _
  $region3: #{bert_dim_pos_extrapol_layer.4} parent=0 // loop_header
    %s9 = sphi 0, %s13
    %p10 = scmp.ge.s32.totalorder %s9, 4
    %s19 = sphi 0, %s21
    %s22 = sphi 0, %s19
    %s23 = sphi 0, %s22
    %s39 = sphi 0, %s23
    %s45 = sphi 0, %s47
    %s48 = sphi 0, %s45
    %s49 = sphi 0, %s48
    %s65 = sphi 0, %s49
    %s71 = sphi 0, %s73
    %s74 = sphi 0, %s71
    %s75 = sphi 0, %s74
    %s91 = sphi 0, %s75
    %s97 = sphi 0, %s99
    %s100 = sphi 0, %s97
    %s101 = sphi 0, %s100
    %s117 = sphi 0, %s101
  $region4: #{bert_dim_pos_extrapol_layer.4} parent=0 // loop_header_branch
    %12 = sbr.rel (%p10) target = $region8
  $region5: #{bert_dim_pos_extrapol_layer.4} parent=0 // loop_body
    %s14 = ssub.s32 %s9, 1
    %s15 = ssub.s32 %s9, 2
    %s16 = sadd.s32 %s9, 1
    %s17 = ssub.s32 %s9, %s16
    %p18 = scmp.eq.s32.totalorder %s17, 0
    %s20 = sadd.s32 %s19, 1
    %s21 = scalar_select %p18, %s19, %s20
    %p24 = pneg %p18
    %p25 = scmp.eq.s32.totalorder %s9, 1
    %p26 = por %p24, %p25
    %p27 = scmp.ne.s32.totalorder %s19, %s22
    %p28 = scmp.eq.s32.totalorder %s9, 0
    %p29 = por %p27, %p28
    %p30 = scmp.ne.s32.totalorder %s19, %s22
    %p31 = scmp.eq.s32.totalorder %s14, 1
    %p32 = por %p30, %p31
    %p33 = scmp.ne.s32.totalorder %s22, %s23
    %p34 = scmp.eq.s32.totalorder %s14, 0
    %p35 = por %p33, %p34
    %p36 = scmp.ne.s32.totalorder %s22, %s23
    %p37 = scmp.eq.s32.totalorder %s15, 1
    %p38 = por %p36, %p37
    %p40 = scmp.ne.s32.totalorder %s23, %s39
    %p41 = scmp.eq.s32.totalorder %s15, 0
    %p42 = por %p40, %p41
    %s43 = ssub.s32 %s9, %s16
    %p44 = scmp.eq.s32.totalorder %s43, 0
    %s46 = sadd.s32 %s45, 1
    %s47 = scalar_select %p44, %s45, %s46
    %p50 = pneg %p44
    %p51 = scmp.eq.s32.totalorder %s9, 1
    %p52 = por %p50, %p51
    %p53 = scmp.ne.s32.totalorder %s45, %s48
    %p54 = scmp.eq.s32.totalorder %s9, 0
    %p55 = por %p53, %p54
    %p56 = scmp.ne.s32.totalorder %s45, %s48
    %p57 = scmp.eq.s32.totalorder %s14, 1
    %p58 = por %p56, %p57
    %p59 = scmp.ne.s32.totalorder %s48, %s49
    %p60 = scmp.eq.s32.totalorder %s14, 0
    %p61 = por %p59, %p60
    %p62 = scmp.ne.s32.totalorder %s48, %s49
    %p63 = scmp.eq.s32.totalorder %s15, 1
    %p64 = por %p62, %p63
    %p66 = scmp.ne.s32.totalorder %s49, %s65
    %p67 = scmp.eq.s32.totalorder %s15, 0
    %p68 = por %p66, %p67
    %s69 = ssub.s32 %s9, %s16
    %p70 = scmp.eq.s32.totalorder %s69, 0
    %s72 = sadd.s32 %s71, 1
    %s73 = scalar_select %p70, %s71, %s72
    %p76 = pneg %p70
    %p77 = scmp.eq.s32.totalorder %s9, 1
    %p78 = por %p76, %p77
    %p79 = scmp.ne.s32.totalorder %s71, %s74
    %p80 = scmp.eq.s32.totalorder %s9, 0
    %p81 = por %p79, %p80
    %p82 = scmp.ne.s32.totalorder %s71, %s74
    %p83 = scmp.eq.s32.totalorder %s14, 1
    %p84 = por %p82, %p83
    %p85 = scmp.ne.s32.totalorder %s74, %s75
    %p86 = scmp.eq.s32.totalorder %s14, 0
    %p87 = por %p85, %p86
    %p88 = scmp.ne.s32.totalorder %s74, %s75
    %p89 = scmp.eq.s32.totalorder %s15, 1
    %p90 = por %p88, %p89
    %p92 = scmp.ne.s32.totalorder %s75, %s91
    %p93 = scmp.eq.s32.totalorder %s15, 0
    %p94 = por %p92, %p93
    %s95 = ssub.s32 %s9, %s16
    %p96 = scmp.eq.s32.totalorder %s95, 0
    %s98 = sadd.s32 %s97, 1
    %s99 = scalar_select %p96, %s97, %s98
    %p102 = pneg %p96
    %p103 = scmp.eq.s32.totalorder %s9, 1
    %p104 = por %p102, %p103
    %p105 = scmp.ne.s32.totalorder %s97, %s100
    %p106 = scmp.eq.s32.totalorder %s9, 0
    %p107 = por %p105, %p106
    %p108 = scmp.ne.s32.totalorder %s97, %s100
    %p109 = scmp.eq.s32.totalorder %s14, 1
    %p110 = por %p108, %p109
    %p111 = scmp.ne.s32.totalorder %s100, %s101
    %p112 = scmp.eq.s32.totalorder %s14, 0
    %p113 = por %p111, %p112
    %p114 = scmp.ne.s32.totalorder %s100, %s101
    %p115 = scmp.eq.s32.totalorder %s15, 1
    %p116 = por %p114, %p115
    %p118 = scmp.ne.s32.totalorder %s101, %s117
    %p119 = scmp.eq.s32.totalorder %s15, 0
    %p120 = por %p118, %p119
    %p121 = scmp.le.s32.totalorder 1, %s9
    %p122 = scmp.lt.s32.totalorder %s9, 3
    %p123 = pnand %p121, %p122
    %p124 = pneg %p123
    // Predicated region
    $region9: #{bert_dim_pos_extrapol_layer.4} parent=5 // pred_check
      _
    $region10: #{bert_dim_pos_extrapol_layer.4} parent=5 // pred_check_branch
      %126 = sbr.rel (%p123) target = $region12
    $region11: #{bert_dim_pos_extrapol_layer.4} parent=5 // pred_region
      %s127 = ssub.s32 %s9, 1
    $region12: #{bert_dim_pos_extrapol_layer.4} parent=5 // pred_fallthru
      _
    %p128 = scmp.lt.s32.totalorder %s9, 2
    // Predicated region
    $region13: #{bert_dim_pos_extrapol_layer.4} parent=5 // pred_check
      %p129 = pneg %p128
    $region14: #{bert_dim_pos_extrapol_layer.4} parent=5 // pred_check_branch
      %131 = sbr.rel (%p129) target = $region16
    $region15: #{bert_dim_pos_extrapol_layer.4} parent=5 // pred_region
      // Predicated region
      $region17: #{bert_dim_pos_extrapol_layer.4} parent=15 // pred_check
        %p132 = pneg %p29
      $region18: #{bert_dim_pos_extrapol_layer.4} parent=15 // pred_check_branch
        %134 = sbr.rel (%p132) target = $region20
      $region19: #{bert_dim_pos_extrapol_layer.4} parent=15 // pred_region
        %p135 = scmp.lt.s32.totalorder %s9, 1
        %s136 = scalar_select %p135, %s9, 1
        %s137 = smul.addr %s136, 8
        %s138 = scalar_lea.vmem %s0, %s137
      $region20: #{bert_dim_pos_extrapol_layer.4} parent=15 // pred_fallthru
        _
      // Predicated region
      $region21: #{bert_dim_pos_extrapol_layer.4} parent=15 // pred_check
        %p139 = pneg %p55
      $region22: #{bert_dim_pos_extrapol_layer.4} parent=15 // pred_check_branch
        %141 = sbr.rel (%p139) target = $region24
      $region23: #{bert_dim_pos_extrapol_layer.4} parent=15 // pred_region
        %p142 = scmp.lt.s32.totalorder %s9, 1
        %s143 = scalar_select %p142, %s9, 1
        %s144 = smul.addr %s143, 8
        %s145 = scalar_lea.vmem %s1, %s144
      $region24: #{bert_dim_pos_extrapol_layer.4} parent=15 // pred_fallthru
        _
      // Predicated region
      $region25: #{bert_dim_pos_extrapol_layer.4} parent=15 // pred_check
        %p146 = pneg %p81
      $region26: #{bert_dim_pos_extrapol_layer.4} parent=15 // pred_check_branch
        %148 = sbr.rel (%p146) target = $region28
      $region27: #{bert_dim_pos_extrapol_layer.4} parent=15 // pred_region
        %p149 = scmp.lt.s32.totalorder %s9, 1
        %s150 = scalar_select %p149, %s9, 1
        %s151 = smul.addr %s150, 8
        %s152 = scalar_lea.vmem %s2, %s151
      $region28: #{bert_dim_pos_extrapol_layer.4} parent=15 // pred_fallthru
        _
    $region16: #{bert_dim_pos_extrapol_layer.4} parent=5 // pred_fallthru
      _
    %p153 = scmp.le.s32.totalorder 1, %s9
    %p154 = scmp.lt.s32.totalorder %s9, 3
    %p155 = pnand %p153, %p154
    %p156 = pneg %p155
    // Predicated region
    $region29: #{bert_dim_pos_extrapol_layer.4} parent=5 // pred_check
      _
    $region30: #{bert_dim_pos_extrapol_layer.4} parent=5 // pred_check_branch
      %158 = sbr.rel (%p155) target = $region32
    $region31: #{bert_dim_pos_extrapol_layer.4} parent=5 // pred_region
      %s159 = ssub.s32 %s9, 1
      %p160 = scmp.lt.s32.totalorder %s14, 1
      %s161 = scalar_select %p160, %s14, 1
      %s162 = smul.addr %s161, 8
      %s163 = scalar_lea.vmem %s0, %s162
      %p164 = pneg %p35
      %p165 = pneg %p32
      %p166 = scmp.lt.s32.totalorder %s14, 1
      %s167 = scalar_select %p166, %s14, 1
      %s168 = smul.addr %s167, 8
      %s169 = scalar_lea.vmem %s1, %s168
      %p170 = pneg %p61
      %p171 = pneg %p58
      %p172 = scmp.lt.s32.totalorder %s14, 1
      %s173 = scalar_select %p172, %s14, 1
      %s174 = smul.addr %s173, 8
      %s175 = scalar_lea.vmem %s2, %s174
      %p176 = pneg %p87
      %p177 = pneg %p84
      %p178 = pneg %p113
      %p179 = pneg %p110
      %p180 = scmp.lt.s32.totalorder %s14, 1
      %s181 = scalar_select %p180, %s14, 1
      %s182 = smul.addr %s181, 8
      %s183 = scalar_lea.vmem %s3, %s182
      %p184 = scmp.lt.s32.totalorder %s14, 1
      %s185 = scalar_select %p184, %s14, 1
      %s186 = smul.addr %s185, 8
      %s187 = scalar_lea.vmem %s0, %s186
      %p188 = scmp.lt.s32.totalorder %s14, 1
      %s189 = scalar_select %p188, %s14, 1
      %s190 = smul.addr %s189, 8
      %s191 = scalar_lea.vmem %s1, %s190
      %p192 = scmp.lt.s32.totalorder %s14, 1
      %s193 = scalar_select %p192, %s14, 1
      %s194 = smul.addr %s193, 8
      %s195 = scalar_lea.vmem %s2, %s194
      %p196 = scmp.lt.s32.totalorder %s14, 1
      %s197 = scalar_select %p196, %s14, 1
      %s198 = smul.addr %s197, 8
      %s199 = scalar_lea.vmem %s3, %s198
      %v200 = vld [vmem:[%s187] sm:$0xff]
      %v201 = vld [vmem:[%s191] sm:$0xff]
      %v202 = vld [vmem:[%s195] sm:$0xff]
      %vm203 = vcmask 64512
      %v205 = vsel %vm203, %v200, 0
      %v208 = vsel %vm203, %v201, 0
      %210 = vmatprep.subr.mxu0 0.0
      %211 = vmatpush1.xpose.msra.mxu0 %v208
      %212 = vmatprep.subr.mxu0 0.0
      %213 = vmatpush1.xpose.msra.mxu0 0.0
      %214 = vmatprep.subr.mxu0 0.0
      %215 = vmatpush1.xpose.msra.mxu0 0.0
      %216 = vmatprep.subr.mxu0 0.0
      %217 = vmatpush1.xpose.msra.mxu0 0.0
      %218 = vmatprep.subr.mxu0 0.0
      %219 = vmatpush1.xpose.msra.mxu0 0.0
      %220 = vmatprep.subr.mxu0 0.0
      %221 = vmatpush1.xpose.msra.mxu0 0.0
      %222 = vmatprep.subr.mxu0 0.0
      %223 = vmatpush1.xpose.msra.mxu0 0.0
      %224 = vmatprep.subr.mxu0 0.0
      %225 = vmatpush1.xpose.msra.mxu0 0.0
      %226 = vmatprep.subr.mxu0 0.0
      %227 = vmatpush1.xpose.msra.mxu0 0.0
      %228 = vmatprep.subr.mxu0 0.0
      %229 = vmatpush1.xpose.msra.mxu0 0.0
      %230 = vmatprep.subr.mxu0 0.0
      %231 = vmatpush1.xpose.msra.mxu0 0.0
      %232 = vmatprep.subr.mxu0 0.0
      %233 = vmatpush1.xpose.msra.mxu0 0.0
      %234 = vmatprep.subr.mxu0 0.0
      %235 = vmatpush1.xpose.msra.mxu0 0.0
      %236 = vmatprep.subr.mxu0 0.0
      %237 = vmatpush1.xpose.msra.mxu0 0.0
      %238 = vmatprep.subr.mxu0 0.0
      %239 = vmatpush1.xpose.msra.mxu0 0.0
      %240 = vmatprep.subr.mxu0 0.0
      %241 = vmatpush1.xpose.msra.mxu0 0.0
      %242 = vmatprep.subr.mxu0 0.0
      %243 = vmatpush1.xpose.msra.mxu0 0.0
      %244 = vmatprep.subr.mxu0 0.0
      %245 = vmatpush1.xpose.msra.mxu0 0.0
      %246 = vmatprep.subr.mxu0 0.0
      %247 = vmatpush1.xpose.msra.mxu0 0.0
      %248 = vmatprep.subr.mxu0 0.0
      %249 = vmatpush1.xpose.msra.mxu0 0.0
      %250 = vmatprep.subr.mxu0 0.0
      %251 = vmatpush1.xpose.msra.mxu0 0.0
      %252 = vmatprep.subr.mxu0 0.0
      %253 = vmatpush1.xpose.msra.mxu0 0.0
      %254 = vmatprep.subr.mxu0 0.0
      %255 = vmatpush1.xpose.msra.mxu0 0.0
      %256 = vmatprep.subr.mxu0 0.0
      %257 = vmatpush1.xpose.msra.mxu0 0.0
      %258 = vmatprep.subr.mxu0 0.0
      %259 = vmatpush1.xpose.msra.mxu0 0.0
      %260 = vmatprep.subr.mxu0 0.0
      %261 = vmatpush1.xpose.msra.mxu0 0.0
      %262 = vmatprep.subr.mxu0 0.0
      %263 = vmatpush1.xpose.msra.mxu0 0.0
      %264 = vmatprep.subr.mxu0 0.0
      %265 = vmatpush1.xpose.msra.mxu0 0.0
      %266 = vmatprep.subr.mxu0 0.0
      %267 = vmatpush1.xpose.msra.mxu0 0.0
      %268 = vmatprep.subr.mxu0 0.0
      %269 = vmatpush1.xpose.msra.mxu0 0.0
      %270 = vmatprep.subr.mxu0 0.0
      %271 = vmatpush1.xpose.msra.mxu0 0.0
      %272 = vmatprep.subr.mxu0 0.0
      %273 = vmatpush1.xpose.msra.mxu0 0.0
      %274 = vmatprep.mubr.f32.mxu0 0.0
      %275 = vmatmul.mubr.f32.gmra.mrb[0].mxu0 %v205
      %v276 = vpop.f32.mrb[0].mxu0
      %v277 = vadd.f32 0.0, %v276
      %v278 = vpop.f32.mrb[0].mxu0
      %279 = vdwg.mxu0
      %v280 = vmul.f32 %v277, 0.35355338
      %v281 = vsel %vm203, %v280, -inf
      %282 = vmax.xlane.f32.xlu0 %v281
      %v283 = vpop.xlane.xlu0 %282
      %v284 = vsub.f32 %v280, %v283
      %v285 = vmul.f32 %v284, 1.442695
      %v286 = vpow.pop %v285
      %v287 = vsel %vm203, %v286, 0.0
      %288 = vadd.xlane.f32.xlu0 %v287
      %v289 = vpop.xlane.xlu0 %288
      %v290 = vrcp.pop %v289
      %v291 = vmul.f32 %v286, %v290
      %v293 = vsel %vm203, %v291, 0
      %295 = vmatprep.subr.mxu0 0.0
      %296 = vmatpush1.msra.mxu0 %v202
      %297 = vmatprep.subr.mxu0 0.0
      %298 = vmatpush1.msra.mxu0 0.0
      %299 = vmatprep.subr.mxu0 0.0
      %300 = vmatpush1.msra.mxu0 0.0
      %301 = vmatprep.subr.mxu0 0.0
      %302 = vmatpush1.msra.mxu0 0.0
      %303 = vmatprep.subr.mxu0 0.0
      %304 = vmatpush1.msra.mxu0 0.0
      %305 = vmatprep.subr.mxu0 0.0
      %306 = vmatpush1.msra.mxu0 0.0
      %307 = vmatprep.subr.mxu0 0.0
      %308 = vmatpush1.msra.mxu0 0.0
      %309 = vmatprep.subr.mxu0 0.0
      %310 = vmatpush1.msra.mxu0 0.0
      %311 = vmatprep.subr.mxu0 0.0
      %312 = vmatpush1.msra.mxu0 0.0
      %313 = vmatprep.subr.mxu0 0.0
      %314 = vmatpush1.msra.mxu0 0.0
      %315 = vmatprep.subr.mxu0 0.0
      %316 = vmatpush1.msra.mxu0 0.0
      %317 = vmatprep.subr.mxu0 0.0
      %318 = vmatpush1.msra.mxu0 0.0
      %319 = vmatprep.subr.mxu0 0.0
      %320 = vmatpush1.msra.mxu0 0.0
      %321 = vmatprep.subr.mxu0 0.0
      %322 = vmatpush1.msra.mxu0 0.0
      %323 = vmatprep.subr.mxu0 0.0
      %324 = vmatpush1.msra.mxu0 0.0
      %325 = vmatprep.subr.mxu0 0.0
      %326 = vmatpush1.msra.mxu0 0.0
      %327 = vmatprep.subr.mxu0 0.0
      %328 = vmatpush1.msra.mxu0 0.0
      %329 = vmatprep.subr.mxu0 0.0
      %330 = vmatpush1.msra.mxu0 0.0
      %331 = vmatprep.subr.mxu0 0.0
      %332 = vmatpush1.msra.mxu0 0.0
      %333 = vmatprep.subr.mxu0 0.0
      %334 = vmatpush1.msra.mxu0 0.0
      %335 = vmatprep.subr.mxu0 0.0
      %336 = vmatpush1.msra.mxu0 0.0
      %337 = vmatprep.subr.mxu0 0.0
      %338 = vmatpush1.msra.mxu0 0.0
      %339 = vmatprep.subr.mxu0 0.0
      %340 = vmatpush1.msra.mxu0 0.0
      %341 = vmatprep.subr.mxu0 0.0
      %342 = vmatpush1.msra.mxu0 0.0
      %343 = vmatprep.subr.mxu0 0.0
      %344 = vmatpush1.msra.mxu0 0.0
      %345 = vmatprep.subr.mxu0 0.0
      %346 = vmatpush1.msra.mxu0 0.0
      %347 = vmatprep.subr.mxu0 0.0
      %348 = vmatpush1.msra.mxu0 0.0
      %349 = vmatprep.subr.mxu0 0.0
      %350 = vmatpush1.msra.mxu0 0.0
      %351 = vmatprep.subr.mxu0 0.0
      %352 = vmatpush1.msra.mxu0 0.0
      %353 = vmatprep.subr.mxu0 0.0
      %354 = vmatpush1.msra.mxu0 0.0
      %355 = vmatprep.subr.mxu0 0.0
      %356 = vmatpush1.msra.mxu0 0.0
      %357 = vmatprep.subr.mxu0 0.0
      %358 = vmatpush1.msra.mxu0 0.0
      %359 = vmatprep.mubr.f32.mxu0 0.0
      %360 = vmatmul.mubr.f32.gmra.mrb[0].mxu0 %v293
      %v361 = vpop.f32.mrb[0].mxu0
      %v362 = vadd.f32 0.0, %v361
      %v363 = vpop.f32.mrb[0].mxu0
      %364 = vdwg.mxu0
      %365 = vst.msk [vmem:[%s199] sm:$0xff] %vm203, %v362
      %366 = vrot.lane.b32.xlu0 %v200, 120
      %v367 = vpop.permute.xlu0 %366
      %368 = vrot.lane.b32.xlu0 %v201, 120
      %v369 = vpop.permute.xlu0 %368
      %v370 = vsel %vm203, %v367, 0
      %v372 = vsel %vm203, %v369, 0
      %374 = vmatprep.subr.mxu0 0.0
      %375 = vmatpush1.xpose.msra.mxu0 %v372
      %376 = vmatprep.subr.mxu0 0.0
      %377 = vmatpush1.xpose.msra.mxu0 0.0
      %378 = vmatprep.subr.mxu0 0.0
      %379 = vmatpush1.xpose.msra.mxu0 0.0
      %380 = vmatprep.subr.mxu0 0.0
      %381 = vmatpush1.xpose.msra.mxu0 0.0
      %382 = vmatprep.subr.mxu0 0.0
      %383 = vmatpush1.xpose.msra.mxu0 0.0
      %384 = vmatprep.subr.mxu0 0.0
      %385 = vmatpush1.xpose.msra.mxu0 0.0
      %386 = vmatprep.subr.mxu0 0.0
      %387 = vmatpush1.xpose.msra.mxu0 0.0
      %388 = vmatprep.subr.mxu0 0.0
      %389 = vmatpush1.xpose.msra.mxu0 0.0
      %390 = vmatprep.subr.mxu0 0.0
      %391 = vmatpush1.xpose.msra.mxu0 0.0
      %392 = vmatprep.subr.mxu0 0.0
      %393 = vmatpush1.xpose.msra.mxu0 0.0
      %394 = vmatprep.subr.mxu0 0.0
      %395 = vmatpush1.xpose.msra.mxu0 0.0
      %396 = vmatprep.subr.mxu0 0.0
      %397 = vmatpush1.xpose.msra.mxu0 0.0
      %398 = vmatprep.subr.mxu0 0.0
      %399 = vmatpush1.xpose.msra.mxu0 0.0
      %400 = vmatprep.subr.mxu0 0.0
      %401 = vmatpush1.xpose.msra.mxu0 0.0
      %402 = vmatprep.subr.mxu0 0.0
      %403 = vmatpush1.xpose.msra.mxu0 0.0
      %404 = vmatprep.subr.mxu0 0.0
      %405 = vmatpush1.xpose.msra.mxu0 0.0
      %406 = vmatprep.subr.mxu0 0.0
      %407 = vmatpush1.xpose.msra.mxu0 0.0
      %408 = vmatprep.subr.mxu0 0.0
      %409 = vmatpush1.xpose.msra.mxu0 0.0
      %410 = vmatprep.subr.mxu0 0.0
      %411 = vmatpush1.xpose.msra.mxu0 0.0
      %412 = vmatprep.subr.mxu0 0.0
      %413 = vmatpush1.xpose.msra.mxu0 0.0
      %414 = vmatprep.subr.mxu0 0.0
      %415 = vmatpush1.xpose.msra.mxu0 0.0
      %416 = vmatprep.subr.mxu0 0.0
      %417 = vmatpush1.xpose.msra.mxu0 0.0
      %418 = vmatprep.subr.mxu0 0.0
      %419 = vmatpush1.xpose.msra.mxu0 0.0
      %420 = vmatprep.subr.mxu0 0.0
      %421 = vmatpush1.xpose.msra.mxu0 0.0
      %422 = vmatprep.subr.mxu0 0.0
      %423 = vmatpush1.xpose.msra.mxu0 0.0
      %424 = vmatprep.subr.mxu0 0.0
      %425 = vmatpush1.xpose.msra.mxu0 0.0
      %426 = vmatprep.subr.mxu0 0.0
      %427 = vmatpush1.xpose.msra.mxu0 0.0
      %428 = vmatprep.subr.mxu0 0.0
      %429 = vmatpush1.xpose.msra.mxu0 0.0
      %430 = vmatprep.subr.mxu0 0.0
      %431 = vmatpush1.xpose.msra.mxu0 0.0
      %432 = vmatprep.subr.mxu0 0.0
      %433 = vmatpush1.xpose.msra.mxu0 0.0
      %434 = vmatprep.subr.mxu0 0.0
      %435 = vmatpush1.xpose.msra.mxu0 0.0
      %436 = vmatprep.subr.mxu0 0.0
      %437 = vmatpush1.xpose.msra.mxu0 0.0
      %438 = vmatprep.mubr.f32.mxu0 0.0
      %439 = vmatmul.mubr.f32.gmra.mrb[0].mxu0 %v370
      %v440 = vpop.f32.mrb[0].mxu0
      %v441 = vadd.f32 0.0, %v440
      %v442 = vpop.f32.mrb[0].mxu0
      %443 = vdwg.mxu0
      %v444 = vmul.f32 %v441, 0.35355338
      %v445 = vsel %vm203, %v444, -inf
      %446 = vmax.xlane.f32.xlu0 %v445
      %v447 = vpop.xlane.xlu0 %446
      %v448 = vsub.f32 %v444, %v447
      %v449 = vmul.f32 %v448, 1.442695
      %v450 = vpow.pop %v449
      %v451 = vsel %vm203, %v450, 0.0
      %452 = vadd.xlane.f32.xlu0 %v451
      %v453 = vpop.xlane.xlu0 %452
      %v454 = vrcp.pop %v453
      %v455 = vmul.f32 %v450, %v454
      %457 = vrot.lane.b32.xlu0 %v202, 120
      %v458 = vpop.permute.xlu0 %457
      %v461 = vsel %vm203, %v455, 0
      %463 = vmatprep.subr.mxu0 0.0
      %464 = vmatpush1.msra.mxu0 %v458
      %465 = vmatprep.subr.mxu0 0.0
      %466 = vmatpush1.msra.mxu0 0.0
      %467 = vmatprep.subr.mxu0 0.0
      %468 = vmatpush1.msra.mxu0 0.0
      %469 = vmatprep.subr.mxu0 0.0
      %470 = vmatpush1.msra.mxu0 0.0
      %471 = vmatprep.subr.mxu0 0.0
      %472 = vmatpush1.msra.mxu0 0.0
      %473 = vmatprep.subr.mxu0 0.0
      %474 = vmatpush1.msra.mxu0 0.0
      %475 = vmatprep.subr.mxu0 0.0
      %476 = vmatpush1.msra.mxu0 0.0
      %477 = vmatprep.subr.mxu0 0.0
      %478 = vmatpush1.msra.mxu0 0.0
      %479 = vmatprep.subr.mxu0 0.0
      %480 = vmatpush1.msra.mxu0 0.0
      %481 = vmatprep.subr.mxu0 0.0
      %482 = vmatpush1.msra.mxu0 0.0
      %483 = vmatprep.subr.mxu0 0.0
      %484 = vmatpush1.msra.mxu0 0.0
      %485 = vmatprep.subr.mxu0 0.0
      %486 = vmatpush1.msra.mxu0 0.0
      %487 = vmatprep.subr.mxu0 0.0
      %488 = vmatpush1.msra.mxu0 0.0
      %489 = vmatprep.subr.mxu0 0.0
      %490 = vmatpush1.msra.mxu0 0.0
      %491 = vmatprep.subr.mxu0 0.0
      %492 = vmatpush1.msra.mxu0 0.0
      %493 = vmatprep.subr.mxu0 0.0
      %494 = vmatpush1.msra.mxu0 0.0
      %495 = vmatprep.subr.mxu0 0.0
      %496 = vmatpush1.msra.mxu0 0.0
      %497 = vmatprep.subr.mxu0 0.0
      %498 = vmatpush1.msra.mxu0 0.0
      %499 = vmatprep.subr.mxu0 0.0
      %500 = vmatpush1.msra.mxu0 0.0
      %501 = vmatprep.subr.mxu0 0.0
      %502 = vmatpush1.msra.mxu0 0.0
      %503 = vmatprep.subr.mxu0 0.0
      %504 = vmatpush1.msra.mxu0 0.0
      %505 = vmatprep.subr.mxu0 0.0
      %506 = vmatpush1.msra.mxu0 0.0
      %507 = vmatprep.subr.mxu0 0.0
      %508 = vmatpush1.msra.mxu0 0.0
      %509 = vmatprep.subr.mxu0 0.0
      %510 = vmatpush1.msra.mxu0 0.0
      %511 = vmatprep.subr.mxu0 0.0
      %512 = vmatpush1.msra.mxu0 0.0
      %513 = vmatprep.subr.mxu0 0.0
      %514 = vmatpush1.msra.mxu0 0.0
      %515 = vmatprep.subr.mxu0 0.0
      %516 = vmatpush1.msra.mxu0 0.0
      %517 = vmatprep.subr.mxu0 0.0
      %518 = vmatpush1.msra.mxu0 0.0
      %519 = vmatprep.subr.mxu0 0.0
      %520 = vmatpush1.msra.mxu0 0.0
      %521 = vmatprep.subr.mxu0 0.0
      %522 = vmatpush1.msra.mxu0 0.0
      %523 = vmatprep.subr.mxu0 0.0
      %524 = vmatpush1.msra.mxu0 0.0
      %525 = vmatprep.subr.mxu0 0.0
      %526 = vmatpush1.msra.mxu0 0.0
      %527 = vmatprep.mubr.f32.mxu0 0.0
      %528 = vmatmul.mubr.f32.gmra.mrb[0].mxu0 %v461
      %v529 = vpop.f32.mrb[0].mxu0
      %v530 = vadd.f32 0.0, %v529
      %v531 = vpop.f32.mrb[0].mxu0
      %532 = vdwg.mxu0
      %534 = vrot.lane.b32.xlu0 %v530, 8
      %v535 = vpop.permute.xlu0 %534
      %vm537 = vcmask 130112
      %538 = vst.msk [vmem:[%s199] sm:$0xff] %vm537, %v535
      %539 = vrot.lane.b32.xlu0 %v200, 112
      %v540 = vpop.permute.xlu0 %539
      %541 = vrot.lane.b32.xlu0 %v201, 112
      %v542 = vpop.permute.xlu0 %541
      %v543 = vsel %vm203, %v540, 0
      %v545 = vsel %vm203, %v542, 0
      %547 = vmatprep.subr.mxu0 0.0
      %548 = vmatpush1.xpose.msra.mxu0 %v545
      %549 = vmatprep.subr.mxu0 0.0
      %550 = vmatpush1.xpose.msra.mxu0 0.0
      %551 = vmatprep.subr.mxu0 0.0
      %552 = vmatpush1.xpose.msra.mxu0 0.0
      %553 = vmatprep.subr.mxu0 0.0
      %554 = vmatpush1.xpose.msra.mxu0 0.0
      %555 = vmatprep.subr.mxu0 0.0
      %556 = vmatpush1.xpose.msra.mxu0 0.0
      %557 = vmatprep.subr.mxu0 0.0
      %558 = vmatpush1.xpose.msra.mxu0 0.0
      %559 = vmatprep.subr.mxu0 0.0
      %560 = vmatpush1.xpose.msra.mxu0 0.0
      %561 = vmatprep.subr.mxu0 0.0
      %562 = vmatpush1.xpose.msra.mxu0 0.0
      %563 = vmatprep.subr.mxu0 0.0
      %564 = vmatpush1.xpose.msra.mxu0 0.0
      %565 = vmatprep.subr.mxu0 0.0
      %566 = vmatpush1.xpose.msra.mxu0 0.0
      %567 = vmatprep.subr.mxu0 0.0
      %568 = vmatpush1.xpose.msra.mxu0 0.0
      %569 = vmatprep.subr.mxu0 0.0
      %570 = vmatpush1.xpose.msra.mxu0 0.0
      %571 = vmatprep.subr.mxu0 0.0
      %572 = vmatpush1.xpose.msra.mxu0 0.0
      %573 = vmatprep.subr.mxu0 0.0
      %574 = vmatpush1.xpose.msra.mxu0 0.0
      %575 = vmatprep.subr.mxu0 0.0
      %576 = vmatpush1.xpose.msra.mxu0 0.0
      %577 = vmatprep.subr.mxu0 0.0
      %578 = vmatpush1.xpose.msra.mxu0 0.0
      %579 = vmatprep.subr.mxu0 0.0
      %580 = vmatpush1.xpose.msra.mxu0 0.0
      %581 = vmatprep.subr.mxu0 0.0
      %582 = vmatpush1.xpose.msra.mxu0 0.0
      %583 = vmatprep.subr.mxu0 0.0
      %584 = vmatpush1.xpose.msra.mxu0 0.0
      %585 = vmatprep.subr.mxu0 0.0
      %586 = vmatpush1.xpose.msra.mxu0 0.0
      %587 = vmatprep.subr.mxu0 0.0
      %588 = vmatpush1.xpose.msra.mxu0 0.0
      %589 = vmatprep.subr.mxu0 0.0
      %590 = vmatpush1.xpose.msra.mxu0 0.0
      %591 = vmatprep.subr.mxu0 0.0
      %592 = vmatpush1.xpose.msra.mxu0 0.0
      %593 = vmatprep.subr.mxu0 0.0
      %594 = vmatpush1.xpose.msra.mxu0 0.0
      %595 = vmatprep.subr.mxu0 0.0
      %596 = vmatpush1.xpose.msra.mxu0 0.0
      %597 = vmatprep.subr.mxu0 0.0
      %598 = vmatpush1.xpose.msra.mxu0 0.0
      %599 = vmatprep.subr.mxu0 0.0
      %600 = vmatpush1.xpose.msra.mxu0 0.0
      %601 = vmatprep.subr.mxu0 0.0
      %602 = vmatpush1.xpose.msra.mxu0 0.0
      %603 = vmatprep.subr.mxu0 0.0
      %604 = vmatpush1.xpose.msra.mxu0 0.0
      %605 = vmatprep.subr.mxu0 0.0
      %606 = vmatpush1.xpose.msra.mxu0 0.0
      %607 = vmatprep.subr.mxu0 0.0
      %608 = vmatpush1.xpose.msra.mxu0 0.0
      %609 = vmatprep.subr.mxu0 0.0
      %610 = vmatpush1.xpose.msra.mxu0 0.0
      %611 = vmatprep.mubr.f32.mxu0 0.0
      %612 = vmatmul.mubr.f32.gmra.mrb[0].mxu0 %v543
      %v613 = vpop.f32.mrb[0].mxu0
      %v614 = vadd.f32 0.0, %v613
      %v615 = vpop.f32.mrb[0].mxu0
      %616 = vdwg.mxu0
      %v617 = vmul.f32 %v614, 0.35355338
      %v618 = vsel %vm203, %v617, -inf
      %619 = vmax.xlane.f32.xlu0 %v618
      %v620 = vpop.xlane.xlu0 %619
      %v621 = vsub.f32 %v617, %v620
      %v622 = vmul.f32 %v621, 1.442695
      %v623 = vpow.pop %v622
      %v624 = vsel %vm203, %v623, 0.0
      %625 = vadd.xlane.f32.xlu0 %v624
      %v626 = vpop.xlane.xlu0 %625
      %v627 = vrcp.pop %v626
      %v628 = vmul.f32 %v623, %v627
      %629 = vrot.lane.b32.xlu0 %v202, 112
      %v630 = vpop.permute.xlu0 %629
      %v633 = vsel %vm203, %v628, 0
      %635 = vmatprep.subr.mxu0 0.0
      %636 = vmatpush1.msra.mxu0 %v630
      %637 = vmatprep.subr.mxu0 0.0
      %638 = vmatpush1.msra.mxu0 0.0
      %639 = vmatprep.subr.mxu0 0.0
      %640 = vmatpush1.msra.mxu0 0.0
      %641 = vmatprep.subr.mxu0 0.0
      %642 = vmatpush1.msra.mxu0 0.0
      %643 = vmatprep.subr.mxu0 0.0
      %644 = vmatpush1.msra.mxu0 0.0
      %645 = vmatprep.subr.mxu0 0.0
      %646 = vmatpush1.msra.mxu0 0.0
      %647 = vmatprep.subr.mxu0 0.0
      %648 = vmatpush1.msra.mxu0 0.0
      %649 = vmatprep.subr.mxu0 0.0
      %650 = vmatpush1.msra.mxu0 0.0
      %651 = vmatprep.subr.mxu0 0.0
      %652 = vmatpush1.msra.mxu0 0.0
      %653 = vmatprep.subr.mxu0 0.0
      %654 = vmatpush1.msra.mxu0 0.0
      %655 = vmatprep.subr.mxu0 0.0
      %656 = vmatpush1.msra.mxu0 0.0
      %657 = vmatprep.subr.mxu0 0.0
      %658 = vmatpush1.msra.mxu0 0.0
      %659 = vmatprep.subr.mxu0 0.0
      %660 = vmatpush1.msra.mxu0 0.0
      %661 = vmatprep.subr.mxu0 0.0
      %662 = vmatpush1.msra.mxu0 0.0
      %663 = vmatprep.subr.mxu0 0.0
      %664 = vmatpush1.msra.mxu0 0.0
      %665 = vmatprep.subr.mxu0 0.0
      %666 = vmatpush1.msra.mxu0 0.0
      %667 = vmatprep.subr.mxu0 0.0
      %668 = vmatpush1.msra.mxu0 0.0
      %669 = vmatprep.subr.mxu0 0.0
      %670 = vmatpush1.msra.mxu0 0.0
      %671 = vmatprep.subr.mxu0 0.0
      %672 = vmatpush1.msra.mxu0 0.0
      %673 = vmatprep.subr.mxu0 0.0
      %674 = vmatpush1.msra.mxu0 0.0
      %675 = vmatprep.subr.mxu0 0.0
      %676 = vmatpush1.msra.mxu0 0.0
      %677 = vmatprep.subr.mxu0 0.0
      %678 = vmatpush1.msra.mxu0 0.0
      %679 = vmatprep.subr.mxu0 0.0
      %680 = vmatpush1.msra.mxu0 0.0
      %681 = vmatprep.subr.mxu0 0.0
      %682 = vmatpush1.msra.mxu0 0.0
      %683 = vmatprep.subr.mxu0 0.0
      %684 = vmatpush1.msra.mxu0 0.0
      %685 = vmatprep.subr.mxu0 0.0
      %686 = vmatpush1.msra.mxu0 0.0
      %687 = vmatprep.subr.mxu0 0.0
      %688 = vmatpush1.msra.mxu0 0.0
      %689 = vmatprep.subr.mxu0 0.0
      %690 = vmatpush1.msra.mxu0 0.0
      %691 = vmatprep.subr.mxu0 0.0
      %692 = vmatpush1.msra.mxu0 0.0
      %693 = vmatprep.subr.mxu0 0.0
      %694 = vmatpush1.msra.mxu0 0.0
      %695 = vmatprep.subr.mxu0 0.0
      %696 = vmatpush1.msra.mxu0 0.0
      %697 = vmatprep.subr.mxu0 0.0
      %698 = vmatpush1.msra.mxu0 0.0
      %699 = vmatprep.mubr.f32.mxu0 0.0
      %700 = vmatmul.mubr.f32.gmra.mrb[0].mxu0 %v633
      %v701 = vpop.f32.mrb[0].mxu0
      %v702 = vadd.f32 0.0, %v701
      %v703 = vpop.f32.mrb[0].mxu0
      %704 = vdwg.mxu0
      %706 = vrot.lane.b32.xlu0 %v702, 16
      %v707 = vpop.permute.xlu0 %706
      %vm709 = vcmask 195712
      %710 = vst.msk [vmem:[%s199] sm:$0xff] %vm709, %v707
      %711 = vrot.lane.b32.xlu0 %v200, 104
      %v712 = vpop.permute.xlu0 %711
      %713 = vrot.lane.b32.xlu0 %v201, 104
      %v714 = vpop.permute.xlu0 %713
      %v715 = vsel %vm203, %v712, 0
      %v717 = vsel %vm203, %v714, 0
      %719 = vmatprep.subr.mxu0 0.0
      %720 = vmatpush1.xpose.msra.mxu0 %v717
      %721 = vmatprep.subr.mxu0 0.0
      %722 = vmatpush1.xpose.msra.mxu0 0.0
      %723 = vmatprep.subr.mxu0 0.0
      %724 = vmatpush1.xpose.msra.mxu0 0.0
      %725 = vmatprep.subr.mxu0 0.0
      %726 = vmatpush1.xpose.msra.mxu0 0.0
      %727 = vmatprep.subr.mxu0 0.0
      %728 = vmatpush1.xpose.msra.mxu0 0.0
      %729 = vmatprep.subr.mxu0 0.0
      %730 = vmatpush1.xpose.msra.mxu0 0.0
      %731 = vmatprep.subr.mxu0 0.0
      %732 = vmatpush1.xpose.msra.mxu0 0.0
      %733 = vmatprep.subr.mxu0 0.0
      %734 = vmatpush1.xpose.msra.mxu0 0.0
      %735 = vmatprep.subr.mxu0 0.0
      %736 = vmatpush1.xpose.msra.mxu0 0.0
      %737 = vmatprep.subr.mxu0 0.0
      %738 = vmatpush1.xpose.msra.mxu0 0.0
      %739 = vmatprep.subr.mxu0 0.0
      %740 = vmatpush1.xpose.msra.mxu0 0.0
      %741 = vmatprep.subr.mxu0 0.0
      %742 = vmatpush1.xpose.msra.mxu0 0.0
      %743 = vmatprep.subr.mxu0 0.0
      %744 = vmatpush1.xpose.msra.mxu0 0.0
      %745 = vmatprep.subr.mxu0 0.0
      %746 = vmatpush1.xpose.msra.mxu0 0.0
      %747 = vmatprep.subr.mxu0 0.0
      %748 = vmatpush1.xpose.msra.mxu0 0.0
      %749 = vmatprep.subr.mxu0 0.0
      %750 = vmatpush1.xpose.msra.mxu0 0.0
      %751 = vmatprep.subr.mxu0 0.0
      %752 = vmatpush1.xpose.msra.mxu0 0.0
      %753 = vmatprep.subr.mxu0 0.0
      %754 = vmatpush1.xpose.msra.mxu0 0.0
      %755 = vmatprep.subr.mxu0 0.0
      %756 = vmatpush1.xpose.msra.mxu0 0.0
      %757 = vmatprep.subr.mxu0 0.0
      %758 = vmatpush1.xpose.msra.mxu0 0.0
      %759 = vmatprep.subr.mxu0 0.0
      %760 = vmatpush1.xpose.msra.mxu0 0.0
      %761 = vmatprep.subr.mxu0 0.0
      %762 = vmatpush1.xpose.msra.mxu0 0.0
      %763 = vmatprep.subr.mxu0 0.0
      %764 = vmatpush1.xpose.msra.mxu0 0.0
      %765 = vmatprep.subr.mxu0 0.0
      %766 = vmatpush1.xpose.msra.mxu0 0.0
      %767 = vmatprep.subr.mxu0 0.0
      %768 = vmatpush1.xpose.msra.mxu0 0.0
      %769 = vmatprep.subr.mxu0 0.0
      %770 = vmatpush1.xpose.msra.mxu0 0.0
      %771 = vmatprep.subr.mxu0 0.0
      %772 = vmatpush1.xpose.msra.mxu0 0.0
      %773 = vmatprep.subr.mxu0 0.0
      %774 = vmatpush1.xpose.msra.mxu0 0.0
      %775 = vmatprep.subr.mxu0 0.0
      %776 = vmatpush1.xpose.msra.mxu0 0.0
      %777 = vmatprep.subr.mxu0 0.0
      %778 = vmatpush1.xpose.msra.mxu0 0.0
      %779 = vmatprep.subr.mxu0 0.0
      %780 = vmatpush1.xpose.msra.mxu0 0.0
      %781 = vmatprep.subr.mxu0 0.0
      %782 = vmatpush1.xpose.msra.mxu0 0.0
      %783 = vmatprep.mubr.f32.mxu0 0.0
      %784 = vmatmul.mubr.f32.gmra.mrb[0].mxu0 %v715
      %v785 = vpop.f32.mrb[0].mxu0
      %v786 = vadd.f32 0.0, %v785
      %v787 = vpop.f32.mrb[0].mxu0
      %788 = vdwg.mxu0
      %v789 = vmul.f32 %v786, 0.35355338
      %v790 = vsel %vm203, %v789, -inf
      %791 = vmax.xlane.f32.xlu0 %v790
      %v792 = vpop.xlane.xlu0 %791
      %v793 = vsub.f32 %v789, %v792
      %v794 = vmul.f32 %v793, 1.442695
      %v795 = vpow.pop %v794
      %v796 = vsel %vm203, %v795, 0.0
      %797 = vadd.xlane.f32.xlu0 %v796
      %v798 = vpop.xlane.xlu0 %797
      %v799 = vrcp.pop %v798
      %v800 = vmul.f32 %v795, %v799
      %801 = vrot.lane.b32.xlu0 %v202, 104
      %v802 = vpop.permute.xlu0 %801
      %v805 = vsel %vm203, %v800, 0
      %807 = vmatprep.subr.mxu0 0.0
      %808 = vmatpush1.msra.mxu0 %v802
      %809 = vmatprep.subr.mxu0 0.0
      %810 = vmatpush1.msra.mxu0 0.0
      %811 = vmatprep.subr.mxu0 0.0
      %812 = vmatpush1.msra.mxu0 0.0
      %813 = vmatprep.subr.mxu0 0.0
      %814 = vmatpush1.msra.mxu0 0.0
      %815 = vmatprep.subr.mxu0 0.0
      %816 = vmatpush1.msra.mxu0 0.0
      %817 = vmatprep.subr.mxu0 0.0
      %818 = vmatpush1.msra.mxu0 0.0
      %819 = vmatprep.subr.mxu0 0.0
      %820 = vmatpush1.msra.mxu0 0.0
      %821 = vmatprep.subr.mxu0 0.0
      %822 = vmatpush1.msra.mxu0 0.0
      %823 = vmatprep.subr.mxu0 0.0
      %824 = vmatpush1.msra.mxu0 0.0
      %825 = vmatprep.subr.mxu0 0.0
      %826 = vmatpush1.msra.mxu0 0.0
      %827 = vmatprep.subr.mxu0 0.0
      %828 = vmatpush1.msra.mxu0 0.0
      %829 = vmatprep.subr.mxu0 0.0
      %830 = vmatpush1.msra.mxu0 0.0
      %831 = vmatprep.subr.mxu0 0.0
      %832 = vmatpush1.msra.mxu0 0.0
      %833 = vmatprep.subr.mxu0 0.0
      %834 = vmatpush1.msra.mxu0 0.0
      %835 = vmatprep.subr.mxu0 0.0
      %836 = vmatpush1.msra.mxu0 0.0
      %837 = vmatprep.subr.mxu0 0.0
      %838 = vmatpush1.msra.mxu0 0.0
      %839 = vmatprep.subr.mxu0 0.0
      %840 = vmatpush1.msra.mxu0 0.0
      %841 = vmatprep.subr.mxu0 0.0
      %842 = vmatpush1.msra.mxu0 0.0
      %843 = vmatprep.subr.mxu0 0.0
      %844 = vmatpush1.msra.mxu0 0.0
      %845 = vmatprep.subr.mxu0 0.0
      %846 = vmatpush1.msra.mxu0 0.0
      %847 = vmatprep.subr.mxu0 0.0
      %848 = vmatpush1.msra.mxu0 0.0
      %849 = vmatprep.subr.mxu0 0.0
      %850 = vmatpush1.msra.mxu0 0.0
      %851 = vmatprep.subr.mxu0 0.0
      %852 = vmatpush1.msra.mxu0 0.0
      %853 = vmatprep.subr.mxu0 0.0
      %854 = vmatpush1.msra.mxu0 0.0
      %855 = vmatprep.subr.mxu0 0.0
      %856 = vmatpush1.msra.mxu0 0.0
      %857 = vmatprep.subr.mxu0 0.0
      %858 = vmatpush1.msra.mxu0 0.0
      %859 = vmatprep.subr.mxu0 0.0
      %860 = vmatpush1.msra.mxu0 0.0
      %861 = vmatprep.subr.mxu0 0.0
      %862 = vmatpush1.msra.mxu0 0.0
      %863 = vmatprep.subr.mxu0 0.0
      %864 = vmatpush1.msra.mxu0 0.0
      %865 = vmatprep.subr.mxu0 0.0
      %866 = vmatpush1.msra.mxu0 0.0
      %867 = vmatprep.subr.mxu0 0.0
      %868 = vmatpush1.msra.mxu0 0.0
      %869 = vmatprep.subr.mxu0 0.0
      %870 = vmatpush1.msra.mxu0 0.0
      %871 = vmatprep.mubr.f32.mxu0 0.0
      %872 = vmatmul.mubr.f32.gmra.mrb[0].mxu0 %v805
      %v873 = vpop.f32.mrb[0].mxu0
      %v874 = vadd.f32 0.0, %v873
      %v875 = vpop.f32.mrb[0].mxu0
      %876 = vdwg.mxu0
      %878 = vrot.lane.b32.xlu0 %v874, 24
      %v879 = vpop.permute.xlu0 %878
      %vm881 = vcmask 261312
      %882 = vst.msk [vmem:[%s199] sm:$0xff] %vm881, %v879
      %p883 = scmp.lt.s32.totalorder %s14, 1
      %s884 = scalar_select %p883, %s14, 1
      %s885 = smul.addr %s884, 8
      %s886 = scalar_lea.vmem %s3, %s885
      // Predicated region
      $region33: #{bert_dim_pos_extrapol_layer.4} parent=31 // pred_check
        %p887 = pneg %p110
      $region34: #{bert_dim_pos_extrapol_layer.4} parent=31 // pred_check_branch
        %889 = sbr.rel (%p887) target = $region36
      $region35: #{bert_dim_pos_extrapol_layer.4} parent=31 // pred_region
        _
      $region36: #{bert_dim_pos_extrapol_layer.4} parent=31 // pred_fallthru
        _
    $region32: #{bert_dim_pos_extrapol_layer.4} parent=5 // pred_fallthru
      _
    %p890 = scmp.le.s32.totalorder 2, %s9
    // Predicated region
    $region37: #{bert_dim_pos_extrapol_layer.4} parent=5 // pred_check
      %p891 = pneg %p890
    $region38: #{bert_dim_pos_extrapol_layer.4} parent=5 // pred_check_branch
      %893 = sbr.rel (%p891) target = $region40
    $region39: #{bert_dim_pos_extrapol_layer.4} parent=5 // pred_region
      %s894 = ssub.s32 %s9, 2
      // Predicated region
      $region41: #{bert_dim_pos_extrapol_layer.4} parent=39 // pred_check
        %p895 = pneg %p116
      $region42: #{bert_dim_pos_extrapol_layer.4} parent=39 // pred_check_branch
        %897 = sbr.rel (%p895) target = $region44
      $region43: #{bert_dim_pos_extrapol_layer.4} parent=39 // pred_region
        %p898 = scmp.lt.s32.totalorder %s15, 1
        %s899 = scalar_select %p898, %s15, 1
        %s900 = smul.addr %s899, 8
        %s901 = scalar_lea.vmem %s3, %s900
      $region44: #{bert_dim_pos_extrapol_layer.4} parent=39 // pred_fallthru
        _
    $region40: #{bert_dim_pos_extrapol_layer.4} parent=5 // pred_fallthru
      _
  $region6: #{bert_dim_pos_extrapol_layer.4} parent=0 // loop_footer
    %s13 = sadd.s32 1, %s9
  $region7: #{bert_dim_pos_extrapol_layer.4} parent=0 // loop_footer_branch
    %8 = sbr.rel target = $region3
  $region8: #{bert_dim_pos_extrapol_layer.4} parent=0 // loop_exit
    _

</llo_original>
